<compile_context>
chip_gen: v5e
topology: v5e:2x2
jax: 0.10.0
libtpu: 0.0.40
codegen_flags: <defaults>
</compile_context>

<pallas_src>
import math

import jax
import jax.numpy as jnp
import numpy as np
from jax.experimental import pallas as pl
from jax.experimental.pallas import tpu as pltpu


def _round_up(n, m):
    return ((n + m - 1) // m) * m


# ----------------------------------------------------------------------------------
# Fused kernel: freq-expand matmul -> cos/sin -> banded block-diag embedding -> MLP
# ----------------------------------------------------------------------------------
def make_fused_kernel(n_linears, n_bands, band_rows, mm_dtype):
    """refs = (x, freq_expand, wc_band, ws_band, b_emb, [W_i, b_i]*n_linears, out).

    x:          (TB, F)              raw batch tile (streamed)
    freq_expand:(F, F*K)             block-diag 2*pi*freq (resident, f32)
    wc_band:    (band_rows, band_cols) compact cos-half of the shared Linear(2K, D)
    ws_band:    (band_rows, band_cols) compact sin-half (same weight for every band)
    b_emb:      (1, F*D)             embedding bias tiled over features (f32)
    W_i, b_i:                        MLP weights (mm_dtype) / biases (f32), 128-padded
    out:        (TB, C_pad)
    """
    def kernel(*refs):
        x_ref, fe_ref, wc_ref, ws_ref, be_ref = refs[:5]
        out_ref = refs[-1]
        wb = refs[5:-1]

        # v[i, f*K + k] = 2*pi * freq[f, k] * x[i, f]  (block-diagonal expansion).
        # Kept f32 so the trig argument is accurate.
        v = jnp.dot(x_ref[...], fe_ref[...], preferred_element_type=jnp.float32)
        c = jnp.cos(v).astype(mm_dtype)
        s = jnp.sin(v).astype(mm_dtype)

        # Shared lite Linear(2K, D): each lane band of cos/sin uses the same compact
        # block-diagonal weight => no multiplying the dense-kron zeros.
        wc = wc_ref[...]
        ws = ws_ref[...]
        if n_bands == 1:
            h = (jnp.dot(c, wc, preferred_element_type=jnp.float32)
                 + jnp.dot(s, ws, preferred_element_type=jnp.float32))
        else:
            pieces = []
            for b in range(n_bands):
                cb = c[:, b * band_rows:(b + 1) * band_rows]
                sb = s[:, b * band_rows:(b + 1) * band_rows]
                pieces.append(jnp.dot(cb, wc, preferred_element_type=jnp.float32)
                              + jnp.dot(sb, ws, preferred_element_type=jnp.float32))
            h = jnp.concatenate(pieces, axis=1)
        h = jnp.maximum(h + be_ref[...], 0.0)                    # embedding ReLU (lite PLR)

        # TODO(synk): training-mode nn.Dropout with p>0 (stochastic masking) not
        # implemented; config uses p=0.0 -> identity (eval semantics).
        for i in range(n_linears):
            w = wb[2 * i][...]
            b = wb[2 * i + 1][...]
            h = jnp.dot(h.astype(mm_dtype), w, preferred_element_type=jnp.float32) + b
            if i < n_linears - 1:
                h = jnp.maximum(h, 0.0)
        out_ref[...] = h.astype(out_ref.dtype)

    return kernel


# ----------------------------------------------------------------------------------
# Model (deterministic parameter init mirroring the torch module's shapes)
# ----------------------------------------------------------------------------------
def _linear_init(key, fan_in, fan_out):
    kw, kb = jax.random.split(key)
    bound = 1.0 / math.sqrt(fan_in)
    w = jax.random.uniform(kw, (fan_in, fan_out), minval=-bound, maxval=bound,
                           dtype=jnp.float32)
    b = jax.random.uniform(kb, (fan_out,), minval=-bound, maxval=bound,
                           dtype=jnp.float32)
    return w, b


class MLP_PLR_Pallas:
    def __init__(self, input_size, num_classes=10, hidden_dim=32, num_layers=2,
                 d_embedding=16, n_frequencies=8, frequency_init_scale=1.0,
                 use_bf16_matmuls=True, key=jax.random.PRNGKey(0)):
        self.F = input_size
        self.K = n_frequencies
        self.D = d_embedding
        self.C = num_classes
        self.mm_dtype = jnp.bfloat16 if use_bf16_matmuls else jnp.float32

        k_freq, k_plin, k_mlp = jax.random.split(key, 3)

        # _Periodic.weight: (F, K), trunc_normal(0, sigma, +-3*sigma)
        self.freq = (frequency_init_scale *
                     jax.random.truncated_normal(k_freq, -3.0, 3.0, (self.F, self.K),
                                                 dtype=jnp.float32))
        # lite shared nn.Linear(2K, D) stored as (2K, D) for x @ W
        self.w_per, self.b_per = _linear_init(k_plin, 2 * self.K, self.D)

        # MLP: Linear(F*D, H), [Linear(H, H)] * num_layers, Linear(H, C)
        dims = [self.F * self.D] + [hidden_dim] * (num_layers + 1) + [num_classes]
        self.mlp_ws, self.mlp_bs = [], []
        keys = jax.random.split(k_mlp, len(dims) - 1)
        for kk, din, dout in zip(keys, dims[:-1], dims[1:]):
            w, b = _linear_init(kk, din, dout)
            self.mlp_ws.append(w)
            self.mlp_bs.append(b)

        # ---------------- kernel-side precomputed / padded parameters ----------------
        # Frequency-expansion matrix (F, F*K), block-diagonal, 2*pi folded in:
        #   FreqExpand[f, f*K + k] = 2*pi * freq[f, k]
        eyeF = jnp.eye(self.F, dtype=jnp.float32)
        self.freq_expand = (2.0 * math.pi *
                            (eyeF[:, :, None] * self.freq[None, :, :])
                            ).reshape(self.F, self.F * self.K)

        # Compact banded embedding weights.  Pick the smallest m such that a band of
        # m features is (8,128)-tile aligned on both the cos/sin axis (m*K) and the
        # output axis (m*D); every band then shares the SAME kron(eye(m), W) weight.
        mK = 128 // math.gcd(self.K, 128)
        mD = 128 // math.gcd(self.D, 128)
        m = mK * mD // math.gcd(mK, mD)
        if m > self.F or self.F % m != 0:
            m = self.F                                   # dense single-band fallback
        self.n_bands = self.F // m
        self.band_rows = m * self.K
        self.band_cols = m * self.D
        eyem = jnp.eye(m, dtype=jnp.float32)
        wc = self.w_per[:self.K]                         # (K, D) cos half
        ws = self.w_per[self.K:]                         # (K, D) sin half
        self.wc_band = jnp.kron(eyem, wc).astype(self.mm_dtype)   # (m*K, m*D)
        self.ws_band = jnp.kron(eyem, ws).astype(self.mm_dtype)
        self.b_emb = jnp.tile(self.b_per, (self.F,)).reshape(1, self.F * self.D)

        # MLP weights zero-padded so every width is a multiple of 128 lanes (unmasked
        # stores, full-lane MXU work), stored in mm_dtype; biases stay f32 (added to
        # the f32 accumulators).  Zero padding keeps the math exact; the final logits
        # are sliced back to C in forward().
        self.mlp_ws_pad, self.mlp_bs_pad = [], []
        prev_pad = self.F * self.D
        for w, b in zip(self.mlp_ws, self.mlp_bs):
            din, dout = w.shape
            dout_pad = _round_up(dout, 128)
            wp = jnp.zeros((prev_pad, dout_pad), jnp.float32).at[:din, :dout].set(w)
            bp = jnp.zeros((1, dout_pad), jnp.float32).at[0, :dout].set(b)
            self.mlp_ws_pad.append(wp.astype(self.mm_dtype))
            self.mlp_bs_pad.append(bp)
            prev_pad = dout_pad
        self.C_pad = prev_pad

        # Single compiled program: pad + pallas_call + slice.
        self._forward_jit = jax.jit(self._forward_impl)

    # ----- Pallas forward ---------------------------------------------------------
    def _forward_impl(self, x):
        B = x.shape[0]
        xf = x.reshape(B, -1).astype(jnp.float32)                # x.view(B, -1)
        assert xf.shape[1] == self.F

        # Batch tiling: large tiles to amortize per-step grid overhead; always use
        # >= 2 grid steps when the batch allows so ("parallel",) can shard the batch
        # across v7x's two TensorCores (harmless extra step on v5e/v6e).
        TB_MAX = 512
        B_pad = _round_up(B, 8)
        if B_pad > TB_MAX:
            TB = TB_MAX
            B_pad = _round_up(B_pad, TB)
        elif B_pad >= 16:
            TB = _round_up((B_pad + 1) // 2, 8)
            B_pad = 2 * TB
        else:
            TB = B_pad
        if B_pad != B:
            xf = jnp.pad(xf, ((0, B_pad - B), (0, 0)))

        FK = self.F * self.K
        FD = self.F * self.D

        inputs = [xf, self.freq_expand, self.wc_band, self.ws_band, self.b_emb]
        in_specs = [
            pl.BlockSpec((TB, self.F), lambda i: (i, 0)),        # streamed raw x tile
            pl.BlockSpec((self.F, FK), lambda i: (0, 0)),        # constants: VMEM-resident
            pl.BlockSpec((self.band_rows, self.band_cols), lambda i: (0, 0)),
            pl.BlockSpec((self.band_rows, self.band_cols), lambda i: (0, 0)),
            pl.BlockSpec((1, FD), lambda i: (0, 0)),
        ]
        for w, b in zip(self.mlp_ws_pad, self.mlp_bs_pad):
            inputs += [w, b]
            in_specs += [pl.BlockSpec(w.shape, lambda i: (0, 0)),
                         pl.BlockSpec(b.shape, lambda i: (0, 0))]
        # Note: all constant operands above total < 1 MiB after the banded/bf16
        # compaction, so default double-buffering costs < 1 MiB of VMEM -- the
        # pl.Buffered(1) suggestion is unnecessary at these sizes.

        out = pl.pallas_call(
            make_fused_kernel(len(self.mlp_ws_pad), self.n_bands, self.band_rows,
                              self.mm_dtype),
            grid=(B_pad // TB,),
            in_specs=in_specs,
            out_specs=pl.BlockSpec((TB, self.C_pad), lambda i: (i, 0)),
            out_shape=jax.ShapeDtypeStruct((B_pad, self.C_pad), jnp.float32),
            compiler_params=pltpu.CompilerParams(
                dimension_semantics=("parallel",),
                vmem_limit_bytes=32 * 1024 * 1024,
            ),
        )(*inputs)

        return out[:B, :self.C]

    def forward(self, x):
        return self._forward_jit(x)

    # ----- pure-JAX reference (mirrors the torch forward, f32) ---------------------
    def reference(self, x):
        B = x.shape[0]
        xf = x.reshape(B, -1).astype(jnp.float32)
        v = 2.0 * math.pi * self.freq[None, :, :] * xf[..., None]        # (B, F, K)
        feats = jnp.concatenate([jnp.cos(v), jnp.sin(v)], axis=-1)        # (B, F, 2K)
        emb = jnp.maximum(feats @ self.w_per + self.b_per, 0.0)           # (B, F, D)
        h = emb.reshape(B, -1)
        for i, (w, b) in enumerate(zip(self.mlp_ws, self.mlp_bs)):
            h = h @ w + b
            if i < len(self.mlp_ws) - 1:
                h = jnp.maximum(h, 0.0)
        return h


# ----------------------------------------------------------------------------------
if __name__ == "__main__":
    key = jax.random.PRNGKey(0)
    # small config: input_size = 1*8*8 = 64 features
    model = MLP_PLR_Pallas(input_size=64, num_classes=10, hidden_dim=32, num_layers=2,
                           d_embedding=16, n_frequencies=8, frequency_init_scale=1.0,
                           use_bf16_matmuls=True, key=key)

    x = jax.random.normal(jax.random.PRNGKey(1), (2, 1, 8, 8), dtype=jnp.float32)

    out = jax.block_until_ready(model.forward(x))
    ref = model.reference(x)

    assert out.shape == (2, 10), out.shape
    # bf16 matmul weights/activations with f32 accumulation vs. the pure-f32
    # reference: expected ~0.2-0.5% relative error, so validate at 1e-2.
    assert np.allclose(np.asarray(out), np.asarray(ref), rtol=1e-2, atol=1e-2), (
        np.max(np.abs(np.asarray(out) - np.asarray(ref))))
    print("KERNEL_OK")
</pallas_src>

<mosaic_0001>
module attributes {stable_mosaic.version = 11 : i64} {
  func.func @kernel(%arg0: i32, %arg1: memref<8x64xf32, #tpu.memory_space<vmem>>, %arg2: memref<64x512xf32, #tpu.memory_space<vmem>>, %arg3: memref<128x256xbf16, #tpu.memory_space<vmem>>, %arg4: memref<128x256xbf16, #tpu.memory_space<vmem>>, %arg5: memref<1x1024xf32, #tpu.memory_space<vmem>>, %arg6: memref<1024x128xbf16, #tpu.memory_space<vmem>>, %arg7: memref<1x128xf32, #tpu.memory_space<vmem>>, %arg8: memref<128x128xbf16, #tpu.memory_space<vmem>>, %arg9: memref<1x128xf32, #tpu.memory_space<vmem>>, %arg10: memref<128x128xbf16, #tpu.memory_space<vmem>>, %arg11: memref<1x128xf32, #tpu.memory_space<vmem>>, %arg12: memref<128x128xbf16, #tpu.memory_space<vmem>>, %arg13: memref<1x128xf32, #tpu.memory_space<vmem>>, %arg14: memref<8x128xf32, #tpu.memory_space<vmem>>) attributes {dimension_semantics = [#tpu.dimension_semantics<parallel>], iteration_bounds = array<i64: 1>, scalar_prefetch = 0 : i64, scratch_operands = 0 : i64, tpu.core_type = #tpu.core_type<tc>, window_params = [{transform_indices = @transform_0, window_bounds = array<i64: 8, 64>}, {pipeline_mode = #tpu.pipeline_mode<synchronous>, transform_indices = @transform_1, window_bounds = array<i64: 64, 512>}, {pipeline_mode = #tpu.pipeline_mode<synchronous>, transform_indices = @transform_2, window_bounds = array<i64: 128, 256>}, {pipeline_mode = #tpu.pipeline_mode<synchronous>, transform_indices = @transform_3, window_bounds = array<i64: 128, 256>}, {pipeline_mode = #tpu.pipeline_mode<synchronous>, transform_indices = @transform_4, window_bounds = array<i64: 1, 1024>}, {pipeline_mode = #tpu.pipeline_mode<synchronous>, transform_indices = @transform_5, window_bounds = array<i64: 1024, 128>}, {pipeline_mode = #tpu.pipeline_mode<synchronous>, transform_indices = @transform_6, window_bounds = array<i64: 1, 128>}, {pipeline_mode = #tpu.pipeline_mode<synchronous>, transform_indices = @transform_7, window_bounds = array<i64: 128, 128>}, {pipeline_mode = #tpu.pipeline_mode<synchronous>, transform_indices = @transform_8, window_bounds = array<i64: 1, 128>}, {pipeline_mode = #tpu.pipeline_mode<synchronous>, transform_indices = @transform_9, window_bounds = array<i64: 128, 128>}, {pipeline_mode = #tpu.pipeline_mode<synchronous>, transform_indices = @transform_10, window_bounds = array<i64: 1, 128>}, {pipeline_mode = #tpu.pipeline_mode<synchronous>, transform_indices = @transform_11, window_bounds = array<i64: 128, 128>}, {pipeline_mode = #tpu.pipeline_mode<synchronous>, transform_indices = @transform_12, window_bounds = array<i64: 1, 128>}, {transform_indices = @transform_13, window_bounds = array<i64: 8, 128>}]} {
    %c0 = arith.constant 0 : index
    %c0_0 = arith.constant 0 : index
    %0 = vector.load %arg1[%c0, %c0_0] : memref<8x64xf32, #tpu.memory_space<vmem>>, vector<8x64xf32>
    %c0_1 = arith.constant 0 : index
    %c0_2 = arith.constant 0 : index
    %1 = vector.load %arg2[%c0_1, %c0_2] : memref<64x512xf32, #tpu.memory_space<vmem>>, vector<64x512xf32>
    %cst = arith.constant dense<0.000000e+00> : vector<8x512xf32>
    %2 = tpu.matmul %0, %1, %cst {dimension_numbers = #tpu.dot_dimension_numbers<[1], [0], [0], [1], [0, 0, 1, 1], [], []>} : vector<8x64xf32>, vector<64x512xf32>, vector<8x512xf32> -> vector<8x512xf32>
    %3 = math.cos %2 : vector<8x512xf32>
    %4 = arith.truncf %3 : vector<8x512xf32> to vector<8x512xbf16>
    %5 = math.sin %2 : vector<8x512xf32>
    %6 = arith.truncf %5 : vector<8x512xf32> to vector<8x512xbf16>
    %c0_3 = arith.constant 0 : index
    %c0_4 = arith.constant 0 : index
    %7 = vector.load %arg3[%c0_3, %c0_4] : memref<128x256xbf16, #tpu.memory_space<vmem>>, vector<128x256xbf16>
    %c0_5 = arith.constant 0 : index
    %c0_6 = arith.constant 0 : index
    %8 = vector.load %arg4[%c0_5, %c0_6] : memref<128x256xbf16, #tpu.memory_space<vmem>>, vector<128x256xbf16>
    %9 = vector.extract_strided_slice %4 {offsets = [0, 0], sizes = [8, 128], strides = [1, 1]} : vector<8x512xbf16> to vector<8x128xbf16>
    %10 = vector.extract_strided_slice %6 {offsets = [0, 0], sizes = [8, 128], strides = [1, 1]} : vector<8x512xbf16> to vector<8x128xbf16>
    %cst_7 = arith.constant dense<0.000000e+00> : vector<8x256xf32>
    %11 = tpu.matmul %9, %7, %cst_7 {dimension_numbers = #tpu.dot_dimension_numbers<[1], [0], [0], [1], [0, 0, 1, 1], [], []>} : vector<8x128xbf16>, vector<128x256xbf16>, vector<8x256xf32> -> vector<8x256xf32>
    %cst_8 = arith.constant dense<0.000000e+00> : vector<8x256xf32>
    %12 = tpu.matmul %10, %8, %cst_8 {dimension_numbers = #tpu.dot_dimension_numbers<[1], [0], [0], [1], [0, 0, 1, 1], [], []>} : vector<8x128xbf16>, vector<128x256xbf16>, vector<8x256xf32> -> vector<8x256xf32>
    %13 = arith.addf %11, %12 : vector<8x256xf32>
    %14 = vector.extract_strided_slice %4 {offsets = [0, 128], sizes = [8, 128], strides = [1, 1]} : vector<8x512xbf16> to vector<8x128xbf16>
    %15 = vector.extract_strided_slice %6 {offsets = [0, 128], sizes = [8, 128], strides = [1, 1]} : vector<8x512xbf16> to vector<8x128xbf16>
    %cst_9 = arith.constant dense<0.000000e+00> : vector<8x256xf32>
    %16 = tpu.matmul %14, %7, %cst_9 {dimension_numbers = #tpu.dot_dimension_numbers<[1], [0], [0], [1], [0, 0, 1, 1], [], []>} : vector<8x128xbf16>, vector<128x256xbf16>, vector<8x256xf32> -> vector<8x256xf32>
    %cst_10 = arith.constant dense<0.000000e+00> : vector<8x256xf32>
    %17 = tpu.matmul %15, %8, %cst_10 {dimension_numbers = #tpu.dot_dimension_numbers<[1], [0], [0], [1], [0, 0, 1, 1], [], []>} : vector<8x128xbf16>, vector<128x256xbf16>, vector<8x256xf32> -> vector<8x256xf32>
    %18 = arith.addf %16, %17 : vector<8x256xf32>
    %19 = vector.extract_strided_slice %4 {offsets = [0, 256], sizes = [8, 128], strides = [1, 1]} : vector<8x512xbf16> to vector<8x128xbf16>
    %20 = vector.extract_strided_slice %6 {offsets = [0, 256], sizes = [8, 128], strides = [1, 1]} : vector<8x512xbf16> to vector<8x128xbf16>
    %cst_11 = arith.constant dense<0.000000e+00> : vector<8x256xf32>
    %21 = tpu.matmul %19, %7, %cst_11 {dimension_numbers = #tpu.dot_dimension_numbers<[1], [0], [0], [1], [0, 0, 1, 1], [], []>} : vector<8x128xbf16>, vector<128x256xbf16>, vector<8x256xf32> -> vector<8x256xf32>
    %cst_12 = arith.constant dense<0.000000e+00> : vector<8x256xf32>
    %22 = tpu.matmul %20, %8, %cst_12 {dimension_numbers = #tpu.dot_dimension_numbers<[1], [0], [0], [1], [0, 0, 1, 1], [], []>} : vector<8x128xbf16>, vector<128x256xbf16>, vector<8x256xf32> -> vector<8x256xf32>
    %23 = arith.addf %21, %22 : vector<8x256xf32>
    %24 = vector.extract_strided_slice %4 {offsets = [0, 384], sizes = [8, 128], strides = [1, 1]} : vector<8x512xbf16> to vector<8x128xbf16>
    %25 = vector.extract_strided_slice %6 {offsets = [0, 384], sizes = [8, 128], strides = [1, 1]} : vector<8x512xbf16> to vector<8x128xbf16>
    %cst_13 = arith.constant dense<0.000000e+00> : vector<8x256xf32>
    %26 = tpu.matmul %24, %7, %cst_13 {dimension_numbers = #tpu.dot_dimension_numbers<[1], [0], [0], [1], [0, 0, 1, 1], [], []>} : vector<8x128xbf16>, vector<128x256xbf16>, vector<8x256xf32> -> vector<8x256xf32>
    %cst_14 = arith.constant dense<0.000000e+00> : vector<8x256xf32>
    %27 = tpu.matmul %25, %8, %cst_14 {dimension_numbers = #tpu.dot_dimension_numbers<[1], [0], [0], [1], [0, 0, 1, 1], [], []>} : vector<8x128xbf16>, vector<128x256xbf16>, vector<8x256xf32> -> vector<8x256xf32>
    %28 = arith.addf %26, %27 : vector<8x256xf32>
    %29 = tpu.concatenate %13, %18, %23, %28 in 1 : vector<8x256xf32>, vector<8x256xf32>, vector<8x256xf32>, vector<8x256xf32> -> vector<8x1024xf32>
    %c0_15 = arith.constant 0 : index
    %c0_16 = arith.constant 0 : index
    %30 = vector.load %arg5[%c0_15, %c0_16] : memref<1x1024xf32, #tpu.memory_space<vmem>>, vector<1x1024xf32>
    %31 = vector.broadcast %30 : vector<1x1024xf32> to vector<8x1024xf32>
    %32 = arith.addf %29, %31 : vector<8x1024xf32>
    %cst_17 = arith.constant 0.000000e+00 : f32
    %33 = vector.broadcast %cst_17 : f32 to vector<8x1024xf32>
    %34 = arith.maximumf %32, %33 : vector<8x1024xf32>
    %c0_18 = arith.constant 0 : index
    %c0_19 = arith.constant 0 : index
    %35 = vector.load %arg6[%c0_18, %c0_19] : memref<1024x128xbf16, #tpu.memory_space<vmem>>, vector<1024x128xbf16>
    %c0_20 = arith.constant 0 : index
    %c0_21 = arith.constant 0 : index
    %36 = vector.load %arg7[%c0_20, %c0_21] : memref<1x128xf32, #tpu.memory_space<vmem>>, vector<1x128xf32>
    %37 = arith.truncf %34 : vector<8x1024xf32> to vector<8x1024xbf16>
    %cst_22 = arith.constant dense<0.000000e+00> : vector<8x128xf32>
    %38 = tpu.matmul %37, %35, %cst_22 {dimension_numbers = #tpu.dot_dimension_numbers<[1], [0], [0], [1], [0, 0, 1, 1], [], []>} : vector<8x1024xbf16>, vector<1024x128xbf16>, vector<8x128xf32> -> vector<8x128xf32>
    %39 = vector.broadcast %36 : vector<1x128xf32> to vector<8x128xf32>
    %40 = arith.addf %38, %39 : vector<8x128xf32>
    %cst_23 = arith.constant 0.000000e+00 : f32
    %41 = vector.broadcast %cst_23 : f32 to vector<8x128xf32>
    %42 = arith.maximumf %40, %41 : vector<8x128xf32>
    %c0_24 = arith.constant 0 : index
    %c0_25 = arith.constant 0 : index
    %43 = vector.load %arg8[%c0_24, %c0_25] : memref<128x128xbf16, #tpu.memory_space<vmem>>, vector<128x128xbf16>
    %c0_26 = arith.constant 0 : index
    %c0_27 = arith.constant 0 : index
    %44 = vector.load %arg9[%c0_26, %c0_27] : memref<1x128xf32, #tpu.memory_space<vmem>>, vector<1x128xf32>
    %45 = arith.truncf %42 : vector<8x128xf32> to vector<8x128xbf16>
    %cst_28 = arith.constant dense<0.000000e+00> : vector<8x128xf32>
    %46 = tpu.matmul %45, %43, %cst_28 {dimension_numbers = #tpu.dot_dimension_numbers<[1], [0], [0], [1], [0, 0, 1, 1], [], []>} : vector<8x128xbf16>, vector<128x128xbf16>, vector<8x128xf32> -> vector<8x128xf32>
    %47 = vector.broadcast %44 : vector<1x128xf32> to vector<8x128xf32>
    %48 = arith.addf %46, %47 : vector<8x128xf32>
    %cst_29 = arith.constant 0.000000e+00 : f32
    %49 = vector.broadcast %cst_29 : f32 to vector<8x128xf32>
    %50 = arith.maximumf %48, %49 : vector<8x128xf32>
    %c0_30 = arith.constant 0 : index
    %c0_31 = arith.constant 0 : index
    %51 = vector.load %arg10[%c0_30, %c0_31] : memref<128x128xbf16, #tpu.memory_space<vmem>>, vector<128x128xbf16>
    %c0_32 = arith.constant 0 : index
    %c0_33 = arith.constant 0 : index
    %52 = vector.load %arg11[%c0_32, %c0_33] : memref<1x128xf32, #tpu.memory_space<vmem>>, vector<1x128xf32>
    %53 = arith.truncf %50 : vector<8x128xf32> to vector<8x128xbf16>
    %cst_34 = arith.constant dense<0.000000e+00> : vector<8x128xf32>
    %54 = tpu.matmul %53, %51, %cst_34 {dimension_numbers = #tpu.dot_dimension_numbers<[1], [0], [0], [1], [0, 0, 1, 1], [], []>} : vector<8x128xbf16>, vector<128x128xbf16>, vector<8x128xf32> -> vector<8x128xf32>
    %55 = vector.broadcast %52 : vector<1x128xf32> to vector<8x128xf32>
    %56 = arith.addf %54, %55 : vector<8x128xf32>
    %cst_35 = arith.constant 0.000000e+00 : f32
    %57 = vector.broadcast %cst_35 : f32 to vector<8x128xf32>
    %58 = arith.maximumf %56, %57 : vector<8x128xf32>
    %c0_36 = arith.constant 0 : index
    %c0_37 = arith.constant 0 : index
    %59 = vector.load %arg12[%c0_36, %c0_37] : memref<128x128xbf16, #tpu.memory_space<vmem>>, vector<128x128xbf16>
    %c0_38 = arith.constant 0 : index
    %c0_39 = arith.constant 0 : index
    %60 = vector.load %arg13[%c0_38, %c0_39] : memref<1x128xf32, #tpu.memory_space<vmem>>, vector<1x128xf32>
    %61 = arith.truncf %58 : vector<8x128xf32> to vector<8x128xbf16>
    %cst_40 = arith.constant dense<0.000000e+00> : vector<8x128xf32>
    %62 = tpu.matmul %61, %59, %cst_40 {dimension_numbers = #tpu.dot_dimension_numbers<[1], [0], [0], [1], [0, 0, 1, 1], [], []>} : vector<8x128xbf16>, vector<128x128xbf16>, vector<8x128xf32> -> vector<8x128xf32>
    %63 = vector.broadcast %60 : vector<1x128xf32> to vector<8x128xf32>
    %64 = arith.addf %62, %63 : vector<8x128xf32>
    %c0_41 = arith.constant 0 : index
    %c0_42 = arith.constant 0 : index
    %65 = vector.load %arg14[%c0_41, %c0_42] : memref<8x128xf32, #tpu.memory_space<vmem>>, vector<8x128xf32>
    tpu.vector_store %arg14[%c0_41, %c0_42], %64 {strides = array<i32>} : memref<8x128xf32, #tpu.memory_space<vmem>>, vector<8x128xf32>,
    return
  }
  func.func @transform_0(%arg0: i32) -> (i32, i32) {
    %c0_i32 = arith.constant 0 : i32
    %c0_i32_0 = arith.constant 0 : i32
    return %arg0, %c0_i32 : i32, i32
  }
  func.func @transform_1(%arg0: i32) -> (i32, i32) {
    %c0_i32 = arith.constant 0 : i32
    %c0_i32_0 = arith.constant 0 : i32
    %c0_i32_1 = arith.constant 0 : i32
    return %c0_i32, %c0_i32_0 : i32, i32
  }
  func.func @transform_2(%arg0: i32) -> (i32, i32) {
    %c0_i32 = arith.constant 0 : i32
    %c0_i32_0 = arith.constant 0 : i32
    %c0_i32_1 = arith.constant 0 : i32
    return %c0_i32, %c0_i32_0 : i32, i32
  }
  func.func @transform_3(%arg0: i32) -> (i32, i32) {
    %c0_i32 = arith.constant 0 : i32
    %c0_i32_0 = arith.constant 0 : i32
    %c0_i32_1 = arith.constant 0 : i32
    return %c0_i32, %c0_i32_0 : i32, i32
  }
  func.func @transform_4(%arg0: i32) -> (i32, i32) {
    %c0_i32 = arith.constant 0 : i32
    %c0_i32_0 = arith.constant 0 : i32
    %c0_i32_1 = arith.constant 0 : i32
    return %c0_i32, %c0_i32_0 : i32, i32
  }
  func.func @transform_5(%arg0: i32) -> (i32, i32) {
    %c0_i32 = arith.constant 0 : i32
    %c0_i32_0 = arith.constant 0 : i32
    %c0_i32_1 = arith.constant 0 : i32
    return %c0_i32, %c0_i32_0 : i32, i32
  }
  func.func @transform_6(%arg0: i32) -> (i32, i32) {
    %c0_i32 = arith.constant 0 : i32
    %c0_i32_0 = arith.constant 0 : i32
    %c0_i32_1 = arith.constant 0 : i32
    return %c0_i32, %c0_i32_0 : i32, i32
  }
  func.func @transform_7(%arg0: i32) -> (i32, i32) {
    %c0_i32 = arith.constant 0 : i32
    %c0_i32_0 = arith.constant 0 : i32
    %c0_i32_1 = arith.constant 0 : i32
    return %c0_i32, %c0_i32_0 : i32, i32
  }
  func.func @transform_8(%arg0: i32) -> (i32, i32) {
    %c0_i32 = arith.constant 0 : i32
    %c0_i32_0 = arith.constant 0 : i32
    %c0_i32_1 = arith.constant 0 : i32
    return %c0_i32, %c0_i32_0 : i32, i32
  }
  func.func @transform_9(%arg0: i32) -> (i32, i32) {
    %c0_i32 = arith.constant 0 : i32
    %c0_i32_0 = arith.constant 0 : i32
    %c0_i32_1 = arith.constant 0 : i32
    return %c0_i32, %c0_i32_0 : i32, i32
  }
  func.func @transform_10(%arg0: i32) -> (i32, i32) {
    %c0_i32 = arith.constant 0 : i32
    %c0_i32_0 = arith.constant 0 : i32
    %c0_i32_1 = arith.constant 0 : i32
    return %c0_i32, %c0_i32_0 : i32, i32
  }
  func.func @transform_11(%arg0: i32) -> (i32, i32) {
    %c0_i32 = arith.constant 0 : i32
    %c0_i32_0 = arith.constant 0 : i32
    %c0_i32_1 = arith.constant 0 : i32
    return %c0_i32, %c0_i32_0 : i32, i32
  }
  func.func @transform_12(%arg0: i32) -> (i32, i32) {
    %c0_i32 = arith.constant 0 : i32
    %c0_i32_0 = arith.constant 0 : i32
    %c0_i32_1 = arith.constant 0 : i32
    return %c0_i32, %c0_i32_0 : i32, i32
  }
  func.func @transform_13(%arg0: i32) -> (i32, i32) {
    %c0_i32 = arith.constant 0 : i32
    %c0_i32_0 = arith.constant 0 : i32
    return %arg0, %c0_i32 : i32, i32
  }
}

</mosaic_0001>

<llo_original>
// kernel: _forward_impl.1
$region0: #{_forward_impl.1}
  #allocation0 [shape = 'u32[]', space=smem, size = 0x4, offset = 0x4, fixed_abs, tag = 'smem constant byte address 0x4 - core index']
  #allocation1 [shape = 'u32[72,128]{1,0:T(1,128)}', space=vmem, size = 0x9000, scoped, tag = 'internal scratch']
  %s0 = inlined_call_operand.vmem [shape: f32[8,64], index: 0, kind: input, shape index: {}]
  %s1 = inlined_call_operand.hbm [shape: f32[64,512], index: 1, kind: input, shape index: {}]
  %s2 = inlined_call_operand.hbm [shape: bf16[128,256], index: 2, kind: input, shape index: {}]
  %s3 = inlined_call_operand.hbm [shape: bf16[128,256], index: 3, kind: input, shape index: {}]
  %s4 = inlined_call_operand.vmem [shape: f32[1,1024], index: 4, kind: input, shape index: {}]
  %s5 = inlined_call_operand.hbm [shape: bf16[1024,128], index: 5, kind: input, shape index: {}]
  %s6 = inlined_call_operand.vmem [shape: f32[1,128], index: 6, kind: input, shape index: {}]
  %s7 = inlined_call_operand.hbm [shape: bf16[128,128], index: 7, kind: input, shape index: {}]
  %s8 = inlined_call_operand.vmem [shape: f32[1,128], index: 8, kind: input, shape index: {}]
  %s9 = inlined_call_operand.hbm [shape: bf16[128,128], index: 9, kind: input, shape index: {}]
  %s10 = inlined_call_operand.vmem [shape: f32[1,128], index: 10, kind: input, shape index: {}]
  %s11 = inlined_call_operand.hbm [shape: bf16[128,128], index: 11, kind: input, shape index: {}]
  %s12 = inlined_call_operand.vmem [shape: f32[1,128], index: 12, kind: input, shape index: {}]
  %s13 = inlined_call_operand.vmem [shape: f32[8,128], index: 13, kind: output, shape index: {}]
  %s14 = sld [smem:[#allocation0]]
  $region90: #{_forward_impl.1} parent=0
    _
  %s16 = ssub.s32 1, %s14
  %s17 = scalar_select 0, %s16, %s14
  $region1: #{_forward_impl.1} parent=0
    #allocation2 [shape = 'u8[131072]{0}', space=vmem, size = 0x20000, scoped, tag = 'input window, operand 1, single buffered']
    #allocation3 [shape = 's32[1]{0}', space=sflag, size = 0x4, scoped, tag = 'scoped memory for _forward_impl.1']
    #allocation4 [shape = 'u8[65536]{0}', space=vmem, size = 0x10000, scoped, tag = 'input window, operand 2, single buffered']
    #allocation5 [shape = 's32[1]{0}', space=sflag, size = 0x4, scoped, tag = 'scoped memory for _forward_impl.1']
    #allocation6 [shape = 'u8[65536]{0}', space=vmem, size = 0x10000, scoped, tag = 'input window, operand 3, single buffered']
    #allocation7 [shape = 'u8[262144]{0}', space=vmem, size = 0x40000, scoped, tag = 'input window, operand 5, single buffered']
    #allocation8 [shape = 's32[1]{0}', space=sflag, size = 0x4, scoped, tag = 'scoped memory for _forward_impl.1']
    #allocation9 [shape = 'u8[32768]{0}', space=vmem, size = 0x8000, scoped, tag = 'input window, operand 7, single buffered']
    #allocation10 [shape = 'u8[32768]{0}', space=vmem, size = 0x8000, scoped, tag = 'input window, operand 9, single buffered']
    #allocation11 [shape = 's32[1]{0}', space=sflag, size = 0x4, scoped, tag = 'scoped memory for _forward_impl.1']
    #allocation12 [shape = 'u8[32768]{0}', space=vmem, size = 0x8000, scoped, tag = 'input window, operand 11, single buffered']
    %18 = vsyncpa [#allocation3], 0
    %19 = vsyncpa [#allocation5], 0
    %20 = vsyncpa [#allocation8], 0
    %21 = vsyncpa [#allocation11], 0
    // Predicated region
    $region2: #{_forward_impl.1} parent=1 // pred_check
      _
    $region3: #{_forward_impl.1} parent=1 // pred_check_branch
      %23 = sbr.rel (0) target = $region5
    $region4: #{_forward_impl.1} parent=1 // pred_region
      _
    $region5: #{_forward_impl.1} parent=1 // pred_fallthru
      _
    // Predicated region
    $region6: #{_forward_impl.1} parent=1 // pred_check
      _
    $region7: #{_forward_impl.1} parent=1 // pred_check_branch
      %25 = sbr.rel (0) target = $region9
    $region8: #{_forward_impl.1} parent=1 // pred_region
      %27 = vsyncadd [#allocation3], 0
      %s28 = sshll.u32 %s1, 4
      %s29 = int_to_ptr.hbm [resolvable:$true] %s28
      %s30 = sshll.u32 [#allocation2], 4
      %s31 = int_to_ptr.vmem [resolvable:$true] %s30
      %36 = dma.hbm_to_vmem [thread:$0]  %s29, 4096, %s31, [#allocation3], 512, 512, 32
    $region9: #{_forward_impl.1} parent=1 // pred_fallthru
      _
    // Predicated region
    $region10: #{_forward_impl.1} parent=1 // pred_check
      _
    $region11: #{_forward_impl.1} parent=1 // pred_check_branch
      %38 = sbr.rel (0) target = $region13
    $region12: #{_forward_impl.1} parent=1 // pred_region
      %40 = vsyncadd [#allocation5], 0
      %s41 = sshll.u32 %s2, 4
      %s42 = int_to_ptr.hbm [resolvable:$true] %s41
      %s43 = sshll.u32 [#allocation4], 4
      %s44 = int_to_ptr.vmem [resolvable:$true] %s43
      %49 = dma.hbm_to_vmem [thread:$0]  %s42, 2048, %s44, [#allocation5], 128, 128, 8
    $region13: #{_forward_impl.1} parent=1 // pred_fallthru
      _
    // Predicated region
    $region14: #{_forward_impl.1} parent=1 // pred_check
      _
    $region15: #{_forward_impl.1} parent=1 // pred_check_branch
      %51 = sbr.rel (0) target = $region17
    $region16: #{_forward_impl.1} parent=1 // pred_region
      %53 = vsyncadd [#allocation5], 0
      %s54 = sshll.u32 %s3, 4
      %s55 = int_to_ptr.hbm [resolvable:$true] %s54
      %s56 = sshll.u32 [#allocation6], 4
      %s57 = int_to_ptr.vmem [resolvable:$true] %s56
      %62 = dma.hbm_to_vmem [thread:$0]  %s55, 2048, %s57, [#allocation5], 128, 128, 8
    $region17: #{_forward_impl.1} parent=1 // pred_fallthru
      _
    // Predicated region
    $region18: #{_forward_impl.1} parent=1 // pred_check
      _
    $region19: #{_forward_impl.1} parent=1 // pred_check_branch
      %64 = sbr.rel (0) target = $region21
    $region20: #{_forward_impl.1} parent=1 // pred_region
      _
    $region21: #{_forward_impl.1} parent=1 // pred_fallthru
      _
    // Predicated region
    $region22: #{_forward_impl.1} parent=1 // pred_check
      _
    $region23: #{_forward_impl.1} parent=1 // pred_check_branch
      %66 = sbr.rel (0) target = $region25
    $region24: #{_forward_impl.1} parent=1 // pred_region
      %68 = vsyncadd [#allocation8], 0
      %s69 = sshll.u32 %s5, 4
      %s70 = int_to_ptr.hbm [resolvable:$true] %s69
      %s71 = sshll.u32 [#allocation7], 4
      %s72 = int_to_ptr.vmem [resolvable:$true] %s71
      %77 = dma.hbm_to_vmem [thread:$0]  %s70, 8192, %s72, [#allocation8], 64, 64, 4
    $region25: #{_forward_impl.1} parent=1 // pred_fallthru
      _
    // Predicated region
    $region26: #{_forward_impl.1} parent=1 // pred_check
      _
    $region27: #{_forward_impl.1} parent=1 // pred_check_branch
      %79 = sbr.rel (0) target = $region29
    $region28: #{_forward_impl.1} parent=1 // pred_region
      _
    $region29: #{_forward_impl.1} parent=1 // pred_fallthru
      _
    // Predicated region
    $region30: #{_forward_impl.1} parent=1 // pred_check
      _
    $region31: #{_forward_impl.1} parent=1 // pred_check_branch
      %81 = sbr.rel (0) target = $region33
    $region32: #{_forward_impl.1} parent=1 // pred_region
      %83 = vsyncadd [#allocation8], 0
      %s84 = sshll.u32 %s7, 4
      %s85 = int_to_ptr.hbm [resolvable:$true] %s84
      %s86 = sshll.u32 [#allocation9], 4
      %s87 = int_to_ptr.vmem [resolvable:$true] %s86
      %92 = dma.hbm_to_vmem [thread:$0]  %s85, 1024, %s87, [#allocation8], 64, 64, 4
    $region33: #{_forward_impl.1} parent=1 // pred_fallthru
      _
    // Predicated region
    $region34: #{_forward_impl.1} parent=1 // pred_check
      _
    $region35: #{_forward_impl.1} parent=1 // pred_check_branch
      %94 = sbr.rel (0) target = $region37
    $region36: #{_forward_impl.1} parent=1 // pred_region
      _
    $region37: #{_forward_impl.1} parent=1 // pred_fallthru
      _
    // Predicated region
    $region38: #{_forward_impl.1} parent=1 // pred_check
      _
    $region39: #{_forward_impl.1} parent=1 // pred_check_branch
      %96 = sbr.rel (0) target = $region41
    $region40: #{_forward_impl.1} parent=1 // pred_region
      %98 = vsyncadd [#allocation11], 0
      %s99 = sshll.u32 %s9, 4
      %s100 = int_to_ptr.hbm [resolvable:$true] %s99
      %s101 = sshll.u32 [#allocation10], 4
      %s102 = int_to_ptr.vmem [resolvable:$true] %s101
      %107 = dma.hbm_to_vmem [thread:$0]  %s100, 1024, %s102, [#allocation11], 64, 64, 4
    $region41: #{_forward_impl.1} parent=1 // pred_fallthru
      _
    // Predicated region
    $region42: #{_forward_impl.1} parent=1 // pred_check
      _
    $region43: #{_forward_impl.1} parent=1 // pred_check_branch
      %109 = sbr.rel (0) target = $region45
    $region44: #{_forward_impl.1} parent=1 // pred_region
      _
    $region45: #{_forward_impl.1} parent=1 // pred_fallthru
      _
    // Predicated region
    $region46: #{_forward_impl.1} parent=1 // pred_check
      _
    $region47: #{_forward_impl.1} parent=1 // pred_check_branch
      %111 = sbr.rel (0) target = $region49
    $region48: #{_forward_impl.1} parent=1 // pred_region
      %113 = vsyncadd [#allocation11], 0
      %s114 = sshll.u32 %s11, 4
      %s115 = int_to_ptr.hbm [resolvable:$true] %s114
      %s116 = sshll.u32 [#allocation12], 4
      %s117 = int_to_ptr.vmem [resolvable:$true] %s116
      %122 = dma.hbm_to_vmem [thread:$0]  %s115, 1024, %s117, [#allocation11], 64, 64, 4
    $region49: #{_forward_impl.1} parent=1 // pred_fallthru
      _
    // Predicated region
    $region50: #{_forward_impl.1} parent=1 // pred_check
      _
    $region51: #{_forward_impl.1} parent=1 // pred_check_branch
      %124 = sbr.rel (0) target = $region53
    $region52: #{_forward_impl.1} parent=1 // pred_region
      _
    $region53: #{_forward_impl.1} parent=1 // pred_fallthru
      _
    // Predicated region
    $region54: #{_forward_impl.1} parent=1 // pred_check
      _
    $region55: #{_forward_impl.1} parent=1 // pred_check_branch
      %126 = sbr.rel (0) target = $region57
    $region56: #{_forward_impl.1} parent=1 // pred_region
      %128 = dma.done [#allocation3], 4096
    $region57: #{_forward_impl.1} parent=1 // pred_fallthru
      _
    // Predicated region
    $region58: #{_forward_impl.1} parent=1 // pred_check
      _
    $region59: #{_forward_impl.1} parent=1 // pred_check_branch
      %130 = sbr.rel (0) target = $region61
    $region60: #{_forward_impl.1} parent=1 // pred_region
      %132 = dma.done [#allocation5], 2048
    $region61: #{_forward_impl.1} parent=1 // pred_fallthru
      _
    // Predicated region
    $region62: #{_forward_impl.1} parent=1 // pred_check
      _
    $region63: #{_forward_impl.1} parent=1 // pred_check_branch
      %134 = sbr.rel (0) target = $region65
    $region64: #{_forward_impl.1} parent=1 // pred_region
      %136 = dma.done [#allocation5], 2048
    $region65: #{_forward_impl.1} parent=1 // pred_fallthru
      _
    // Predicated region
    $region66: #{_forward_impl.1} parent=1 // pred_check
      _
    $region67: #{_forward_impl.1} parent=1 // pred_check_branch
      %138 = sbr.rel (0) target = $region69
    $region68: #{_forward_impl.1} parent=1 // pred_region
      %140 = dma.done [#allocation8], 8192
    $region69: #{_forward_impl.1} parent=1 // pred_fallthru
      _
    // Predicated region
    $region70: #{_forward_impl.1} parent=1 // pred_check
      _
    $region71: #{_forward_impl.1} parent=1 // pred_check_branch
      %142 = sbr.rel (0) target = $region73
    $region72: #{_forward_impl.1} parent=1 // pred_region
      %144 = dma.done [#allocation8], 1024
    $region73: #{_forward_impl.1} parent=1 // pred_fallthru
      _
    // Predicated region
    $region74: #{_forward_impl.1} parent=1 // pred_check
      _
    $region75: #{_forward_impl.1} parent=1 // pred_check_branch
      %146 = sbr.rel (0) target = $region77
    $region76: #{_forward_impl.1} parent=1 // pred_region
      %148 = dma.done [#allocation11], 1024
    $region77: #{_forward_impl.1} parent=1 // pred_fallthru
      _
    // Predicated region
    $region78: #{_forward_impl.1} parent=1 // pred_check
      _
    $region79: #{_forward_impl.1} parent=1 // pred_check_branch
      %150 = sbr.rel (0) target = $region81
    $region80: #{_forward_impl.1} parent=1 // pred_region
      %152 = dma.done [#allocation11], 1024
    $region81: #{_forward_impl.1} parent=1 // pred_fallthru
      _
    %v153 = vld [vmem:[%s0] sm:$0xff]
    %v154 = vld [vmem:[#allocation2] sm:$0xff]
    %v155 = vld [vmem:[#allocation2 + $0x8] sm:$0xff]
    %v156 = vld [vmem:[#allocation2 + $0x10] sm:$0xff]
    %v157 = vld [vmem:[#allocation2 + $0x18] sm:$0xff]
    %v158 = vld [vmem:[#allocation2 + $0x20] sm:$0xff]
    %v159 = vld [vmem:[#allocation2 + $0x28] sm:$0xff]
    %v160 = vld [vmem:[#allocation2 + $0x30] sm:$0xff]
    %v161 = vld [vmem:[#allocation2 + $0x38] sm:$0xff]
    %v162 = vld [vmem:[#allocation2 + $0x40] sm:$0xff]
    %v163 = vld [vmem:[#allocation2 + $0x48] sm:$0xff]
    %v164 = vld [vmem:[#allocation2 + $0x50] sm:$0xff]
    %v165 = vld [vmem:[#allocation2 + $0x58] sm:$0xff]
    %v166 = vld [vmem:[#allocation2 + $0x60] sm:$0xff]
    %v167 = vld [vmem:[#allocation2 + $0x68] sm:$0xff]
    %v168 = vld [vmem:[#allocation2 + $0x70] sm:$0xff]
    %v169 = vld [vmem:[#allocation2 + $0x78] sm:$0xff]
    %v170 = vld [vmem:[#allocation2 + $0x80] sm:$0xff]
    %v171 = vld [vmem:[#allocation2 + $0x88] sm:$0xff]
    %v172 = vld [vmem:[#allocation2 + $0x90] sm:$0xff]
    %v173 = vld [vmem:[#allocation2 + $0x98] sm:$0xff]
    %v174 = vld [vmem:[#allocation2 + $0xa0] sm:$0xff]
    %v175 = vld [vmem:[#allocation2 + $0xa8] sm:$0xff]
    %v176 = vld [vmem:[#allocation2 + $0xb0] sm:$0xff]
    %v177 = vld [vmem:[#allocation2 + $0xb8] sm:$0xff]
    %v178 = vld [vmem:[#allocation2 + $0xc0] sm:$0xff]
    %v179 = vld [vmem:[#allocation2 + $0xc8] sm:$0xff]
    %v180 = vld [vmem:[#allocation2 + $0xd0] sm:$0xff]
    %v181 = vld [vmem:[#allocation2 + $0xd8] sm:$0xff]
    %v182 = vld [vmem:[#allocation2 + $0xe0] sm:$0xff]
    %v183 = vld [vmem:[#allocation2 + $0xe8] sm:$0xff]
    %v184 = vld [vmem:[#allocation2 + $0xf0] sm:$0xff]
    %v185 = vld [vmem:[#allocation2 + $0xf8] sm:$0xff]
    %vm186 = vcmask 523264
    %v188 = vsel %vm186, %v153, 0
    %190 = vmatpush.msra.mxu0 0.0
    %191 = vmatpush.msra.mxu0 0.0
    %192 = vmatpush.msra.mxu0 0.0
    %193 = vmatpush.msra.mxu0 0.0
    %194 = vmatpush.msra.mxu0 0.0
    %195 = vmatpush.msra.mxu0 0.0
    %196 = vmatpush.msra.mxu0 0.0
    %197 = vmatpush.msra.mxu0 0.0
    %198 = vmatpush.msra.mxu0 %v182
    %199 = vmatpush.msra.mxu0 %v178
    %200 = vmatpush.msra.mxu0 %v174
    %201 = vmatpush.msra.mxu0 %v170
    %202 = vmatpush.msra.mxu0 %v166
    %203 = vmatpush.msra.mxu0 %v162
    %204 = vmatpush.msra.mxu0 %v158
    %205 = vmatpush.msra.mxu0 %v154
    %206 = vmatmul.f32.gmra.mxu0 %v188
    %v207 = vpop.f32.mrf.mxu0
    %v208 = vadd.f32 0.0, %v207
    %209 = vdwg.mxu0
    %210 = vmatpush.msra.mxu0 0.0
    %211 = vmatpush.msra.mxu0 0.0
    %212 = vmatpush.msra.mxu0 0.0
    %213 = vmatpush.msra.mxu0 0.0
    %214 = vmatpush.msra.mxu0 0.0
    %215 = vmatpush.msra.mxu0 0.0
    %216 = vmatpush.msra.mxu0 0.0
    %217 = vmatpush.msra.mxu0 0.0
    %218 = vmatpush.msra.mxu0 %v183
    %219 = vmatpush.msra.mxu0 %v179
    %220 = vmatpush.msra.mxu0 %v175
    %221 = vmatpush.msra.mxu0 %v171
    %222 = vmatpush.msra.mxu0 %v167
    %223 = vmatpush.msra.mxu0 %v163
    %224 = vmatpush.msra.mxu0 %v159
    %225 = vmatpush.msra.mxu0 %v155
    %226 = vmatmul.f32.gmra.mxu0 %v188
    %v227 = vpop.f32.mrf.mxu0
    %v228 = vadd.f32 0.0, %v227
    %229 = vdwg.mxu0
    %230 = vmatpush.msra.mxu0 0.0
    %231 = vmatpush.msra.mxu0 0.0
    %232 = vmatpush.msra.mxu0 0.0
    %233 = vmatpush.msra.mxu0 0.0
    %234 = vmatpush.msra.mxu0 0.0
    %235 = vmatpush.msra.mxu0 0.0
    %236 = vmatpush.msra.mxu0 0.0
    %237 = vmatpush.msra.mxu0 0.0
    %238 = vmatpush.msra.mxu0 %v184
    %239 = vmatpush.msra.mxu0 %v180
    %240 = vmatpush.msra.mxu0 %v176
    %241 = vmatpush.msra.mxu0 %v172
    %242 = vmatpush.msra.mxu0 %v168
    %243 = vmatpush.msra.mxu0 %v164
    %244 = vmatpush.msra.mxu0 %v160
    %245 = vmatpush.msra.mxu0 %v156
    %246 = vmatmul.f32.gmra.mxu0 %v188
    %v247 = vpop.f32.mrf.mxu0
    %v248 = vadd.f32 0.0, %v247
    %249 = vdwg.mxu0
    %250 = vmatpush.msra.mxu0 0.0
    %251 = vmatpush.msra.mxu0 0.0
    %252 = vmatpush.msra.mxu0 0.0
    %253 = vmatpush.msra.mxu0 0.0
    %254 = vmatpush.msra.mxu0 0.0
    %255 = vmatpush.msra.mxu0 0.0
    %256 = vmatpush.msra.mxu0 0.0
    %257 = vmatpush.msra.mxu0 0.0
    %258 = vmatpush.msra.mxu0 %v185
    %259 = vmatpush.msra.mxu0 %v181
    %260 = vmatpush.msra.mxu0 %v177
    %261 = vmatpush.msra.mxu0 %v173
    %262 = vmatpush.msra.mxu0 %v169
    %263 = vmatpush.msra.mxu0 %v165
    %264 = vmatpush.msra.mxu0 %v161
    %265 = vmatpush.msra.mxu0 %v157
    %266 = vmatmul.f32.gmra.mxu0 %v188
    %v267 = vpop.f32.mrf.mxu0
    %v268 = vadd.f32 0.0, %v267
    %269 = vdwg.mxu0
    %v270 = vand.u32 2147483647, %v208
    %vm271 = vcmp.le.f32.partialorder %v270, 0.7853982
    %vm272 = vcmp.lt.s32.totalorder %v208, 0
    %v273 = vand.u32 %v208, 2139095040
    %v274 = vshrl.u32 %v273, 23
    %v275 = vsub.s32 %v274, 127
    %v276 = vand.u32 2147483647, %v208
    %v277 = vand.u32 %v276, 8388607
    %v278 = vor.u32 %v277, 8388608
    %v279 = vsub.s32 0, %v278
    %v280 = vadd.s32 %v275, 1
    %vm281 = vcmp.gt.s32.totalorder %v280, 0
    %v282 = vsel %vm281, %v280, 0
    %v283 = vshrl.u32 %v282, 5
    %v284 = vand.u32 %v282, 31
    %v285 = vsub.s32 32, %v284
    %v286 = vshrl.u32 683565275, %v285
    %v287 = vshll.u32 683565275, %v284
    %v288 = vshrl.u32 2475754826, %v285
    %v289 = vor.u32 %v287, %v288
    %v290 = vshll.u32 2475754826, %v284
    %v291 = vshrl.u32 2131351028, %v285
    %v292 = vor.u32 %v290, %v291
    %v293 = vshll.u32 2131351028, %v284
    %v294 = vshrl.u32 2102212464, %v285
    %v295 = vor.u32 %v293, %v294
    %v296 = vshll.u32 2102212464, %v284
    %v297 = vshrl.u32 920167782, %v285
    %v298 = vor.u32 %v296, %v297
    %v299 = vshll.u32 920167782, %v284
    %v300 = vshrl.u32 1326507024, %v285
    %v301 = vor.u32 %v299, %v300
    %vm302 = vcmp.lt.s32.totalorder %v283, 1
    %vm303 = vcmp.lt.s32.totalorder %v283, 2
    %vm304 = vcmp.lt.s32.totalorder %v283, 3
    %vm305 = vcmp.lt.s32.totalorder %v283, 4
    %v306 = vsel %vm302, %v286, %v289
    %v307 = vsel %vm305, %v295, 2102212464
    %v308 = vsel %vm304, %v292, %v307
    %v309 = vsel %vm303, %v306, %v308
    %v310 = vsel %vm302, %v289, %v292
    %v311 = vsel %vm305, %v298, 920167782
    %v312 = vsel %vm304, %v295, %v311
    %v313 = vsel %vm303, %v310, %v312
    %v314 = vsel %vm302, %v292, %v295
    %v315 = vsel %vm305, %v301, 1326507024
    %v316 = vsel %vm304, %v298, %v315
    %v317 = vsel %vm303, %v314, %v316
    %v318 = vshll.u32 %v278, 8
    %v319 = vand.u32 %v318, 65535
    %v320 = vshrl.u32 %v318, 16
    %v321 = vand.u32 %v317, 65535
    %v322 = vshrl.u32 %v317, 16
    %v323 = vmul.u32 %v319, %v321
    %v324 = vmul.u32 %v319, %v322
    %v325 = vmul.u32 %v320, %v321
    %v326 = vmul.u32 %v320, %v322
    %v327 = vshll.u32 %v324, 16
    %v328 = vshrl.u32 %v324, 16
    %v329 = vshll.u32 %v325, 16
    %v330 = vshrl.u32 %v325, 16
    %vm331 = vc.u32 %v323, %v327
    %v332 = vsel %vm331, 1, 0
    %v333 = vadd.s32 %v323, %v327
    %v334 = vadd.s32 %v326, %v332
    %vm335 = vc.u32 %v333, %v329
    %v336 = vsel %vm335, 1, 0
    %v337 = vadd.s32 %v333, %v329
    %v338 = vadd.s32 %v334, %v336
    %v339 = vadd.s32 %v338, %v328
    %v340 = vadd.s32 %v339, %v330
    %v341 = vand.u32 %v318, 65535
    %v342 = vshrl.u32 %v318, 16
    %v343 = vand.u32 %v313, 65535
    %v344 = vshrl.u32 %v313, 16
    %v345 = vmul.u32 %v341, %v343
    %v346 = vmul.u32 %v341, %v344
    %v347 = vmul.u32 %v342, %v343
    %v348 = vmul.u32 %v342, %v344
    %v349 = vshll.u32 %v346, 16
    %v350 = vshrl.u32 %v346, 16
    %v351 = vshll.u32 %v347, 16
    %v352 = vshrl.u32 %v347, 16
    %vm353 = vc.u32 %v345, %v349
    %v354 = vsel %vm353, 1, 0
    %v355 = vadd.s32 %v345, %v349
    %v356 = vadd.s32 %v348, %v354
    %vm357 = vc.u32 %v355, %v351
    %v358 = vsel %vm357, 1, 0
    %v359 = vadd.s32 %v355, %v351
    %v360 = vadd.s32 %v356, %v358
    %v361 = vadd.s32 %v360, %v350
    %v362 = vadd.s32 %v361, %v352
    %v363 = vmul.u32 %v318, %v309
    %v364 = vadd.s32 %v340, %v359
    %vm365 = vc.u32 %v340, %v359
    %v366 = vadd.s32 %v362, 1
    %v367 = vsel %vm365, %v366, %v362
    %v368 = vadd.s32 %v363, %v367
    %v369 = vadd.s32 %v368, 536870912
    %v370 = vshrl.u32 %v369, 30
    %v371 = vshll.u32 %v370, 30
    %v372 = vsub.s32 %v368, %v371
    %vm373 = vcmp.lt.s32.totalorder %v372, 0
    %v374 = vsub.s32 0, %v372
    %v375 = vsel %vm373, %v374, %v372
    %v376 = vclz %v375
    %v377 = vsub.s32 %v376, 2
    %vm378 = vcmp.gt.s32.totalorder 0, %v377
    %v379 = vsel %vm378, 0, %v377
    %v380 = vsub.s32 32, %v379
    %v381 = vshll.u32 %v372, %v379
    %v382 = vshrl.u32 %v364, %v380
    %v383 = vor.u32 %v381, %v382
    %v384 = vsub.s32 4294967266, %v379
    %v385 = vadd.s32 %v384, 127
    %v386 = vshll.u32 %v385, 23
    %v387 = vor.u32 4788187, %v386
    %v388 = vand.u32 2147483647, %v387
    %v390 = vcvt.s32.f32 %v383
    %v391 = vmul.f32 %v390, %v388
    %v392 = vxor.u32 %v391, 2147483648
    %v393 = vsel %vm272, %v392, %v391
    %v394 = vsub.s32 4, %v370
    %v395 = vsel %vm272, %v394, %v370
    %v396 = vsel %vm271, %v208, %v393
    %v397 = vsel %vm271, 0, %v395
    %v398 = vmul.f32 %v396, %v396
    %v399 = vmul.f32 %v398, -0.001358992
    %v400 = vadd.f32 %v399, 0.041655596
    %v401 = vmul.f32 %v398, %v400
    %v402 = vadd.f32 %v401, -0.4999988
    %v403 = vmul.f32 %v398, %v402
    %v404 = vadd.f32 1.0, %v403
    %v405 = vmul.f32 %v396, %v396
    %v406 = vmul.f32 %v405, -0.00019511016
    %v407 = vadd.f32 %v406, 0.008332121
    %v408 = vmul.f32 %v405, %v407
    %v409 = vadd.f32 %v408, -0.16666654
    %v410 = vmul.f32 %v405, %v409
    %v411 = vadd.f32 %v410, 1.0
    %v412 = vmul.f32 %v411, %v396
    %vm413 = vweird.f32 %v208
    %v414 = vand.u32 %v397, 3
    %vm415 = vcmp.lt.s32.totalorder %v414, 2
    %vm416 = vcmp.eq.s32.totalorder %v414, 0
    %v417 = vxor.u32 %v412, 2147483648
    %v418 = vsel %vm416, %v404, %v417
    %vm419 = vcmp.eq.s32.totalorder %v414, 2
    %v420 = vxor.u32 %v404, 2147483648
    %v421 = vsel %vm419, %v420, %v412
    %v422 = vsel %vm415, %v418, %v421
    %v423 = vsel %vm413, nan, %v422
    %v424 = vand.u32 2147483647, %v228
    %vm425 = vcmp.le.f32.partialorder %v424, 0.7853982
    %vm426 = vcmp.lt.s32.totalorder %v228, 0
    %v427 = vand.u32 %v228, 2139095040
    %v428 = vshrl.u32 %v427, 23
    %v429 = vsub.s32 %v428, 127
    %v430 = vand.u32 2147483647, %v228
    %v431 = vand.u32 %v430, 8388607
    %v432 = vor.u32 %v431, 8388608
    %v433 = vsub.s32 0, %v432
    %v434 = vadd.s32 %v429, 1
    %vm435 = vcmp.gt.s32.totalorder %v434, 0
    %v436 = vsel %vm435, %v434, 0
    %v437 = vshrl.u32 %v436, 5
    %v438 = vand.u32 %v436, 31
    %v439 = vsub.s32 32, %v438
    %v440 = vshrl.u32 683565275, %v439
    %v441 = vshll.u32 683565275, %v438
    %v442 = vshrl.u32 2475754826, %v439
    %v443 = vor.u32 %v441, %v442
    %v444 = vshll.u32 2475754826, %v438
    %v445 = vshrl.u32 2131351028, %v439
    %v446 = vor.u32 %v444, %v445
    %v447 = vshll.u32 2131351028, %v438
    %v448 = vshrl.u32 2102212464, %v439
    %v449 = vor.u32 %v447, %v448
    %v450 = vshll.u32 2102212464, %v438
    %v451 = vshrl.u32 920167782, %v439
    %v452 = vor.u32 %v450, %v451
    %v453 = vshll.u32 920167782, %v438
    %v454 = vshrl.u32 1326507024, %v439
    %v455 = vor.u32 %v453, %v454
    %vm456 = vcmp.lt.s32.totalorder %v437, 1
    %vm457 = vcmp.lt.s32.totalorder %v437, 2
    %vm458 = vcmp.lt.s32.totalorder %v437, 3
    %vm459 = vcmp.lt.s32.totalorder %v437, 4
    %v460 = vsel %vm456, %v440, %v443
    %v461 = vsel %vm459, %v449, 2102212464
    %v462 = vsel %vm458, %v446, %v461
    %v463 = vsel %vm457, %v460, %v462
    %v464 = vsel %vm456, %v443, %v446
    %v465 = vsel %vm459, %v452, 920167782
    %v466 = vsel %vm458, %v449, %v465
    %v467 = vsel %vm457, %v464, %v466
    %v468 = vsel %vm456, %v446, %v449
    %v469 = vsel %vm459, %v455, 1326507024
    %v470 = vsel %vm458, %v452, %v469
    %v471 = vsel %vm457, %v468, %v470
    %v472 = vshll.u32 %v432, 8
    %v473 = vand.u32 %v472, 65535
    %v474 = vshrl.u32 %v472, 16
    %v475 = vand.u32 %v471, 65535
    %v476 = vshrl.u32 %v471, 16
    %v477 = vmul.u32 %v473, %v475
    %v478 = vmul.u32 %v473, %v476
    %v479 = vmul.u32 %v474, %v475
    %v480 = vmul.u32 %v474, %v476
    %v481 = vshll.u32 %v478, 16
    %v482 = vshrl.u32 %v478, 16
    %v483 = vshll.u32 %v479, 16
    %v484 = vshrl.u32 %v479, 16
    %vm485 = vc.u32 %v477, %v481
    %v486 = vsel %vm485, 1, 0
    %v487 = vadd.s32 %v477, %v481
    %v488 = vadd.s32 %v480, %v486
    %vm489 = vc.u32 %v487, %v483
    %v490 = vsel %vm489, 1, 0
    %v491 = vadd.s32 %v487, %v483
    %v492 = vadd.s32 %v488, %v490
    %v493 = vadd.s32 %v492, %v482
    %v494 = vadd.s32 %v493, %v484
    %v495 = vand.u32 %v472, 65535
    %v496 = vshrl.u32 %v472, 16
    %v497 = vand.u32 %v467, 65535
    %v498 = vshrl.u32 %v467, 16
    %v499 = vmul.u32 %v495, %v497
    %v500 = vmul.u32 %v495, %v498
    %v501 = vmul.u32 %v496, %v497
    %v502 = vmul.u32 %v496, %v498
    %v503 = vshll.u32 %v500, 16
    %v504 = vshrl.u32 %v500, 16
    %v505 = vshll.u32 %v501, 16
    %v506 = vshrl.u32 %v501, 16
    %vm507 = vc.u32 %v499, %v503
    %v508 = vsel %vm507, 1, 0
    %v509 = vadd.s32 %v499, %v503
    %v510 = vadd.s32 %v502, %v508
    %vm511 = vc.u32 %v509, %v505
    %v512 = vsel %vm511, 1, 0
    %v513 = vadd.s32 %v509, %v505
    %v514 = vadd.s32 %v510, %v512
    %v515 = vadd.s32 %v514, %v504
    %v516 = vadd.s32 %v515, %v506
    %v517 = vmul.u32 %v472, %v463
    %v518 = vadd.s32 %v494, %v513
    %vm519 = vc.u32 %v494, %v513
    %v520 = vadd.s32 %v516, 1
    %v521 = vsel %vm519, %v520, %v516
    %v522 = vadd.s32 %v517, %v521
    %v523 = vadd.s32 %v522, 536870912
    %v524 = vshrl.u32 %v523, 30
    %v525 = vshll.u32 %v524, 30
    %v526 = vsub.s32 %v522, %v525
    %vm527 = vcmp.lt.s32.totalorder %v526, 0
    %v528 = vsub.s32 0, %v526
    %v529 = vsel %vm527, %v528, %v526
    %v530 = vclz %v529
    %v531 = vsub.s32 %v530, 2
    %vm532 = vcmp.gt.s32.totalorder 0, %v531
    %v533 = vsel %vm532, 0, %v531
    %v534 = vsub.s32 32, %v533
    %v535 = vshll.u32 %v526, %v533
    %v536 = vshrl.u32 %v518, %v534
    %v537 = vor.u32 %v535, %v536
    %v538 = vsub.s32 4294967266, %v533
    %v539 = vadd.s32 %v538, 127
    %v540 = vshll.u32 %v539, 23
    %v541 = vor.u32 4788187, %v540
    %v542 = vand.u32 2147483647, %v541
    %v544 = vcvt.s32.f32 %v537
    %v545 = vmul.f32 %v544, %v542
    %v546 = vxor.u32 %v545, 2147483648
    %v547 = vsel %vm426, %v546, %v545
    %v548 = vsub.s32 4, %v524
    %v549 = vsel %vm426, %v548, %v524
    %v550 = vsel %vm425, %v228, %v547
    %v551 = vsel %vm425, 0, %v549
    %v552 = vmul.f32 %v550, %v550
    %v553 = vmul.f32 %v552, -0.001358992
    %v554 = vadd.f32 %v553, 0.041655596
    %v555 = vmul.f32 %v552, %v554
    %v556 = vadd.f32 %v555, -0.4999988
    %v557 = vmul.f32 %v552, %v556
    %v558 = vadd.f32 1.0, %v557
    %v559 = vmul.f32 %v550, %v550
    %v560 = vmul.f32 %v559, -0.00019511016
    %v561 = vadd.f32 %v560, 0.008332121
    %v562 = vmul.f32 %v559, %v561
    %v563 = vadd.f32 %v562, -0.16666654
    %v564 = vmul.f32 %v559, %v563
    %v565 = vadd.f32 %v564, 1.0
    %v566 = vmul.f32 %v565, %v550
    %vm567 = vweird.f32 %v228
    %v568 = vand.u32 %v551, 3
    %vm569 = vcmp.lt.s32.totalorder %v568, 2
    %vm570 = vcmp.eq.s32.totalorder %v568, 0
    %v571 = vxor.u32 %v566, 2147483648
    %v572 = vsel %vm570, %v558, %v571
    %vm573 = vcmp.eq.s32.totalorder %v568, 2
    %v574 = vxor.u32 %v558, 2147483648
    %v575 = vsel %vm573, %v574, %v566
    %v576 = vsel %vm569, %v572, %v575
    %v577 = vsel %vm567, nan, %v576
    %v578 = vand.u32 2147483647, %v248
    %vm579 = vcmp.le.f32.partialorder %v578, 0.7853982
    %vm580 = vcmp.lt.s32.totalorder %v248, 0
    %v581 = vand.u32 %v248, 2139095040
    %v582 = vshrl.u32 %v581, 23
    %v583 = vsub.s32 %v582, 127
    %v584 = vand.u32 2147483647, %v248
    %v585 = vand.u32 %v584, 8388607
    %v586 = vor.u32 %v585, 8388608
    %v587 = vsub.s32 0, %v586
    %v588 = vadd.s32 %v583, 1
    %vm589 = vcmp.gt.s32.totalorder %v588, 0
    %v590 = vsel %vm589, %v588, 0
    %v591 = vshrl.u32 %v590, 5
    %v592 = vand.u32 %v590, 31
    %v593 = vsub.s32 32, %v592
    %v594 = vshrl.u32 683565275, %v593
    %v595 = vshll.u32 683565275, %v592
    %v596 = vshrl.u32 2475754826, %v593
    %v597 = vor.u32 %v595, %v596
    %v598 = vshll.u32 2475754826, %v592
    %v599 = vshrl.u32 2131351028, %v593
    %v600 = vor.u32 %v598, %v599
    %v601 = vshll.u32 2131351028, %v592
    %v602 = vshrl.u32 2102212464, %v593
    %v603 = vor.u32 %v601, %v602
    %v604 = vshll.u32 2102212464, %v592
    %v605 = vshrl.u32 920167782, %v593
    %v606 = vor.u32 %v604, %v605
    %v607 = vshll.u32 920167782, %v592
    %v608 = vshrl.u32 1326507024, %v593
    %v609 = vor.u32 %v607, %v608
    %vm610 = vcmp.lt.s32.totalorder %v591, 1
    %vm611 = vcmp.lt.s32.totalorder %v591, 2
    %vm612 = vcmp.lt.s32.totalorder %v591, 3
    %vm613 = vcmp.lt.s32.totalorder %v591, 4
    %v614 = vsel %vm610, %v594, %v597
    %v615 = vsel %vm613, %v603, 2102212464
    %v616 = vsel %vm612, %v600, %v615
    %v617 = vsel %vm611, %v614, %v616
    %v618 = vsel %vm610, %v597, %v600
    %v619 = vsel %vm613, %v606, 920167782
    %v620 = vsel %vm612, %v603, %v619
    %v621 = vsel %vm611, %v618, %v620
    %v622 = vsel %vm610, %v600, %v603
    %v623 = vsel %vm613, %v609, 1326507024
    %v624 = vsel %vm612, %v606, %v623
    %v625 = vsel %vm611, %v622, %v624
    %v626 = vshll.u32 %v586, 8
    %v627 = vand.u32 %v626, 65535
    %v628 = vshrl.u32 %v626, 16
    %v629 = vand.u32 %v625, 65535
    %v630 = vshrl.u32 %v625, 16
    %v631 = vmul.u32 %v627, %v629
    %v632 = vmul.u32 %v627, %v630
    %v633 = vmul.u32 %v628, %v629
    %v634 = vmul.u32 %v628, %v630
    %v635 = vshll.u32 %v632, 16
    %v636 = vshrl.u32 %v632, 16
    %v637 = vshll.u32 %v633, 16
    %v638 = vshrl.u32 %v633, 16
    %vm639 = vc.u32 %v631, %v635
    %v640 = vsel %vm639, 1, 0
    %v641 = vadd.s32 %v631, %v635
    %v642 = vadd.s32 %v634, %v640
    %vm643 = vc.u32 %v641, %v637
    %v644 = vsel %vm643, 1, 0
    %v645 = vadd.s32 %v641, %v637
    %v646 = vadd.s32 %v642, %v644
    %v647 = vadd.s32 %v646, %v636
    %v648 = vadd.s32 %v647, %v638
    %v649 = vand.u32 %v626, 65535
    %v650 = vshrl.u32 %v626, 16
    %v651 = vand.u32 %v621, 65535
    %v652 = vshrl.u32 %v621, 16
    %v653 = vmul.u32 %v649, %v651
    %v654 = vmul.u32 %v649, %v652
    %v655 = vmul.u32 %v650, %v651
    %v656 = vmul.u32 %v650, %v652
    %v657 = vshll.u32 %v654, 16
    %v658 = vshrl.u32 %v654, 16
    %v659 = vshll.u32 %v655, 16
    %v660 = vshrl.u32 %v655, 16
    %vm661 = vc.u32 %v653, %v657
    %v662 = vsel %vm661, 1, 0
    %v663 = vadd.s32 %v653, %v657
    %v664 = vadd.s32 %v656, %v662
    %vm665 = vc.u32 %v663, %v659
    %v666 = vsel %vm665, 1, 0
    %v667 = vadd.s32 %v663, %v659
    %v668 = vadd.s32 %v664, %v666
    %v669 = vadd.s32 %v668, %v658
    %v670 = vadd.s32 %v669, %v660
    %v671 = vmul.u32 %v626, %v617
    %v672 = vadd.s32 %v648, %v667
    %vm673 = vc.u32 %v648, %v667
    %v674 = vadd.s32 %v670, 1
    %v675 = vsel %vm673, %v674, %v670
    %v676 = vadd.s32 %v671, %v675
    %v677 = vadd.s32 %v676, 536870912
    %v678 = vshrl.u32 %v677, 30
    %v679 = vshll.u32 %v678, 30
    %v680 = vsub.s32 %v676, %v679
    %vm681 = vcmp.lt.s32.totalorder %v680, 0
    %v682 = vsub.s32 0, %v680
    %v683 = vsel %vm681, %v682, %v680
    %v684 = vclz %v683
    %v685 = vsub.s32 %v684, 2
    %vm686 = vcmp.gt.s32.totalorder 0, %v685
    %v687 = vsel %vm686, 0, %v685
    %v688 = vsub.s32 32, %v687
    %v689 = vshll.u32 %v680, %v687
    %v690 = vshrl.u32 %v672, %v688
    %v691 = vor.u32 %v689, %v690
    %v692 = vsub.s32 4294967266, %v687
    %v693 = vadd.s32 %v692, 127
    %v694 = vshll.u32 %v693, 23
    %v695 = vor.u32 4788187, %v694
    %v696 = vand.u32 2147483647, %v695
    %v698 = vcvt.s32.f32 %v691
    %v699 = vmul.f32 %v698, %v696
    %v700 = vxor.u32 %v699, 2147483648
    %v701 = vsel %vm580, %v700, %v699
    %v702 = vsub.s32 4, %v678
    %v703 = vsel %vm580, %v702, %v678
    %v704 = vsel %vm579, %v248, %v701
    %v705 = vsel %vm579, 0, %v703
    %v706 = vmul.f32 %v704, %v704
    %v707 = vmul.f32 %v706, -0.001358992
    %v708 = vadd.f32 %v707, 0.041655596
    %v709 = vmul.f32 %v706, %v708
    %v710 = vadd.f32 %v709, -0.4999988
    %v711 = vmul.f32 %v706, %v710
    %v712 = vadd.f32 1.0, %v711
    %v713 = vmul.f32 %v704, %v704
    %v714 = vmul.f32 %v713, -0.00019511016
    %v715 = vadd.f32 %v714, 0.008332121
    %v716 = vmul.f32 %v713, %v715
    %v717 = vadd.f32 %v716, -0.16666654
    %v718 = vmul.f32 %v713, %v717
    %v719 = vadd.f32 %v718, 1.0
    %v720 = vmul.f32 %v719, %v704
    %vm721 = vweird.f32 %v248
    %v722 = vand.u32 %v705, 3
    %vm723 = vcmp.lt.s32.totalorder %v722, 2
    %vm724 = vcmp.eq.s32.totalorder %v722, 0
    %v725 = vxor.u32 %v720, 2147483648
    %v726 = vsel %vm724, %v712, %v725
    %vm727 = vcmp.eq.s32.totalorder %v722, 2
    %v728 = vxor.u32 %v712, 2147483648
    %v729 = vsel %vm727, %v728, %v720
    %v730 = vsel %vm723, %v726, %v729
    %v731 = vsel %vm721, nan, %v730
    %v732 = vand.u32 2147483647, %v268
    %vm733 = vcmp.le.f32.partialorder %v732, 0.7853982
    %vm734 = vcmp.lt.s32.totalorder %v268, 0
    %v735 = vand.u32 %v268, 2139095040
    %v736 = vshrl.u32 %v735, 23
    %v737 = vsub.s32 %v736, 127
    %v738 = vand.u32 2147483647, %v268
    %v739 = vand.u32 %v738, 8388607
    %v740 = vor.u32 %v739, 8388608
    %v741 = vsub.s32 0, %v740
    %v742 = vadd.s32 %v737, 1
    %vm743 = vcmp.gt.s32.totalorder %v742, 0
    %v744 = vsel %vm743, %v742, 0
    %v745 = vshrl.u32 %v744, 5
    %v746 = vand.u32 %v744, 31
    %v747 = vsub.s32 32, %v746
    %v748 = vshrl.u32 683565275, %v747
    %v749 = vshll.u32 683565275, %v746
    %v750 = vshrl.u32 2475754826, %v747
    %v751 = vor.u32 %v749, %v750
    %v752 = vshll.u32 2475754826, %v746
    %v753 = vshrl.u32 2131351028, %v747
    %v754 = vor.u32 %v752, %v753
    %v755 = vshll.u32 2131351028, %v746
    %v756 = vshrl.u32 2102212464, %v747
    %v757 = vor.u32 %v755, %v756
    %v758 = vshll.u32 2102212464, %v746
    %v759 = vshrl.u32 920167782, %v747
    %v760 = vor.u32 %v758, %v759
    %v761 = vshll.u32 920167782, %v746
    %v762 = vshrl.u32 1326507024, %v747
    %v763 = vor.u32 %v761, %v762
    %vm764 = vcmp.lt.s32.totalorder %v745, 1
    %vm765 = vcmp.lt.s32.totalorder %v745, 2
    %vm766 = vcmp.lt.s32.totalorder %v745, 3
    %vm767 = vcmp.lt.s32.totalorder %v745, 4
    %v768 = vsel %vm764, %v748, %v751
    %v769 = vsel %vm767, %v757, 2102212464
    %v770 = vsel %vm766, %v754, %v769
    %v771 = vsel %vm765, %v768, %v770
    %v772 = vsel %vm764, %v751, %v754
    %v773 = vsel %vm767, %v760, 920167782
    %v774 = vsel %vm766, %v757, %v773
    %v775 = vsel %vm765, %v772, %v774
    %v776 = vsel %vm764, %v754, %v757
    %v777 = vsel %vm767, %v763, 1326507024
    %v778 = vsel %vm766, %v760, %v777
    %v779 = vsel %vm765, %v776, %v778
    %v780 = vshll.u32 %v740, 8
    %v781 = vand.u32 %v780, 65535
    %v782 = vshrl.u32 %v780, 16
    %v783 = vand.u32 %v779, 65535
    %v784 = vshrl.u32 %v779, 16
    %v785 = vmul.u32 %v781, %v783
    %v786 = vmul.u32 %v781, %v784
    %v787 = vmul.u32 %v782, %v783
    %v788 = vmul.u32 %v782, %v784
    %v789 = vshll.u32 %v786, 16
    %v790 = vshrl.u32 %v786, 16
    %v791 = vshll.u32 %v787, 16
    %v792 = vshrl.u32 %v787, 16
    %vm793 = vc.u32 %v785, %v789
    %v794 = vsel %vm793, 1, 0
    %v795 = vadd.s32 %v785, %v789
    %v796 = vadd.s32 %v788, %v794
    %vm797 = vc.u32 %v795, %v791
    %v798 = vsel %vm797, 1, 0
    %v799 = vadd.s32 %v795, %v791
    %v800 = vadd.s32 %v796, %v798
    %v801 = vadd.s32 %v800, %v790
    %v802 = vadd.s32 %v801, %v792
    %v803 = vand.u32 %v780, 65535
    %v804 = vshrl.u32 %v780, 16
    %v805 = vand.u32 %v775, 65535
    %v806 = vshrl.u32 %v775, 16
    %v807 = vmul.u32 %v803, %v805
    %v808 = vmul.u32 %v803, %v806
    %v809 = vmul.u32 %v804, %v805
    %v810 = vmul.u32 %v804, %v806
    %v811 = vshll.u32 %v808, 16
    %v812 = vshrl.u32 %v808, 16
    %v813 = vshll.u32 %v809, 16
    %v814 = vshrl.u32 %v809, 16
    %vm815 = vc.u32 %v807, %v811
    %v816 = vsel %vm815, 1, 0
    %v817 = vadd.s32 %v807, %v811
    %v818 = vadd.s32 %v810, %v816
    %vm819 = vc.u32 %v817, %v813
    %v820 = vsel %vm819, 1, 0
    %v821 = vadd.s32 %v817, %v813
    %v822 = vadd.s32 %v818, %v820
    %v823 = vadd.s32 %v822, %v812
    %v824 = vadd.s32 %v823, %v814
    %v825 = vmul.u32 %v780, %v771
    %v826 = vadd.s32 %v802, %v821
    %vm827 = vc.u32 %v802, %v821
    %v828 = vadd.s32 %v824, 1
    %v829 = vsel %vm827, %v828, %v824
    %v830 = vadd.s32 %v825, %v829
    %v831 = vadd.s32 %v830, 536870912
    %v832 = vshrl.u32 %v831, 30
    %v833 = vshll.u32 %v832, 30
    %v834 = vsub.s32 %v830, %v833
    %vm835 = vcmp.lt.s32.totalorder %v834, 0
    %v836 = vsub.s32 0, %v834
    %v837 = vsel %vm835, %v836, %v834
    %v838 = vclz %v837
    %v839 = vsub.s32 %v838, 2
    %vm840 = vcmp.gt.s32.totalorder 0, %v839
    %v841 = vsel %vm840, 0, %v839
    %v842 = vsub.s32 32, %v841
    %v843 = vshll.u32 %v834, %v841
    %v844 = vshrl.u32 %v826, %v842
    %v845 = vor.u32 %v843, %v844
    %v846 = vsub.s32 4294967266, %v841
    %v847 = vadd.s32 %v846, 127
    %v848 = vshll.u32 %v847, 23
    %v849 = vor.u32 4788187, %v848
    %v850 = vand.u32 2147483647, %v849
    %v852 = vcvt.s32.f32 %v845
    %v853 = vmul.f32 %v852, %v850
    %v854 = vxor.u32 %v853, 2147483648
    %v855 = vsel %vm734, %v854, %v853
    %v856 = vsub.s32 4, %v832
    %v857 = vsel %vm734, %v856, %v832
    %v858 = vsel %vm733, %v268, %v855
    %v859 = vsel %vm733, 0, %v857
    %v860 = vmul.f32 %v858, %v858
    %v861 = vmul.f32 %v860, -0.001358992
    %v862 = vadd.f32 %v861, 0.041655596
    %v863 = vmul.f32 %v860, %v862
    %v864 = vadd.f32 %v863, -0.4999988
    %v865 = vmul.f32 %v860, %v864
    %v866 = vadd.f32 1.0, %v865
    %v867 = vmul.f32 %v858, %v858
    %v868 = vmul.f32 %v867, -0.00019511016
    %v869 = vadd.f32 %v868, 0.008332121
    %v870 = vmul.f32 %v867, %v869
    %v871 = vadd.f32 %v870, -0.16666654
    %v872 = vmul.f32 %v867, %v871
    %v873 = vadd.f32 %v872, 1.0
    %v874 = vmul.f32 %v873, %v858
    %vm875 = vweird.f32 %v268
    %v876 = vand.u32 %v859, 3
    %vm877 = vcmp.lt.s32.totalorder %v876, 2
    %vm878 = vcmp.eq.s32.totalorder %v876, 0
    %v879 = vxor.u32 %v874, 2147483648
    %v880 = vsel %vm878, %v866, %v879
    %vm881 = vcmp.eq.s32.totalorder %v876, 2
    %v882 = vxor.u32 %v866, 2147483648
    %v883 = vsel %vm881, %v882, %v874
    %v884 = vsel %vm877, %v880, %v883
    %v885 = vsel %vm875, nan, %v884
    %v886 = vpack.c.bf16 %v577, %v423
    %v887 = vpack.c.bf16 %v885, %v731
    %v888 = vand.u32 2147483647, %v208
    %vm889 = vcmp.le.f32.partialorder %v888, 0.7853982
    %vm890 = vcmp.lt.s32.totalorder %v208, 0
    %v891 = vand.u32 %v208, 2139095040
    %v892 = vshrl.u32 %v891, 23
    %v893 = vsub.s32 %v892, 127
    %v894 = vand.u32 2147483647, %v208
    %v895 = vand.u32 %v894, 8388607
    %v896 = vor.u32 %v895, 8388608
    %v897 = vsub.s32 0, %v896
    %v898 = vadd.s32 %v893, 1
    %vm899 = vcmp.gt.s32.totalorder %v898, 0
    %v900 = vsel %vm899, %v898, 0
    %v901 = vshrl.u32 %v900, 5
    %v902 = vand.u32 %v900, 31
    %v903 = vsub.s32 32, %v902
    %v904 = vshrl.u32 683565275, %v903
    %v905 = vshll.u32 683565275, %v902
    %v906 = vshrl.u32 2475754826, %v903
    %v907 = vor.u32 %v905, %v906
    %v908 = vshll.u32 2475754826, %v902
    %v909 = vshrl.u32 2131351028, %v903
    %v910 = vor.u32 %v908, %v909
    %v911 = vshll.u32 2131351028, %v902
    %v912 = vshrl.u32 2102212464, %v903
    %v913 = vor.u32 %v911, %v912
    %v914 = vshll.u32 2102212464, %v902
    %v915 = vshrl.u32 920167782, %v903
    %v916 = vor.u32 %v914, %v915
    %v917 = vshll.u32 920167782, %v902
    %v918 = vshrl.u32 1326507024, %v903
    %v919 = vor.u32 %v917, %v918
    %vm920 = vcmp.lt.s32.totalorder %v901, 1
    %vm921 = vcmp.lt.s32.totalorder %v901, 2
    %vm922 = vcmp.lt.s32.totalorder %v901, 3
    %vm923 = vcmp.lt.s32.totalorder %v901, 4
    %v924 = vsel %vm920, %v904, %v907
    %v925 = vsel %vm923, %v913, 2102212464
    %v926 = vsel %vm922, %v910, %v925
    %v927 = vsel %vm921, %v924, %v926
    %v928 = vsel %vm920, %v907, %v910
    %v929 = vsel %vm923, %v916, 920167782
    %v930 = vsel %vm922, %v913, %v929
    %v931 = vsel %vm921, %v928, %v930
    %v932 = vsel %vm920, %v910, %v913
    %v933 = vsel %vm923, %v919, 1326507024
    %v934 = vsel %vm922, %v916, %v933
    %v935 = vsel %vm921, %v932, %v934
    %v936 = vshll.u32 %v896, 8
    %v937 = vand.u32 %v936, 65535
    %v938 = vshrl.u32 %v936, 16
    %v939 = vand.u32 %v935, 65535
    %v940 = vshrl.u32 %v935, 16
    %v941 = vmul.u32 %v937, %v939
    %v942 = vmul.u32 %v937, %v940
    %v943 = vmul.u32 %v938, %v939
    %v944 = vmul.u32 %v938, %v940
    %v945 = vshll.u32 %v942, 16
    %v946 = vshrl.u32 %v942, 16
    %v947 = vshll.u32 %v943, 16
    %v948 = vshrl.u32 %v943, 16
    %vm949 = vc.u32 %v941, %v945
    %v950 = vsel %vm949, 1, 0
    %v951 = vadd.s32 %v941, %v945
    %v952 = vadd.s32 %v944, %v950
    %vm953 = vc.u32 %v951, %v947
    %v954 = vsel %vm953, 1, 0
    %v955 = vadd.s32 %v951, %v947
    %v956 = vadd.s32 %v952, %v954
    %v957 = vadd.s32 %v956, %v946
    %v958 = vadd.s32 %v957, %v948
    %v959 = vand.u32 %v936, 65535
    %v960 = vshrl.u32 %v936, 16
    %v961 = vand.u32 %v931, 65535
    %v962 = vshrl.u32 %v931, 16
    %v963 = vmul.u32 %v959, %v961
    %v964 = vmul.u32 %v959, %v962
    %v965 = vmul.u32 %v960, %v961
    %v966 = vmul.u32 %v960, %v962
    %v967 = vshll.u32 %v964, 16
    %v968 = vshrl.u32 %v964, 16
    %v969 = vshll.u32 %v965, 16
    %v970 = vshrl.u32 %v965, 16
    %vm971 = vc.u32 %v963, %v967
    %v972 = vsel %vm971, 1, 0
    %v973 = vadd.s32 %v963, %v967
    %v974 = vadd.s32 %v966, %v972
    %vm975 = vc.u32 %v973, %v969
    %v976 = vsel %vm975, 1, 0
    %v977 = vadd.s32 %v973, %v969
    %v978 = vadd.s32 %v974, %v976
    %v979 = vadd.s32 %v978, %v968
    %v980 = vadd.s32 %v979, %v970
    %v981 = vmul.u32 %v936, %v927
    %v982 = vadd.s32 %v958, %v977
    %vm983 = vc.u32 %v958, %v977
    %v984 = vadd.s32 %v980, 1
    %v985 = vsel %vm983, %v984, %v980
    %v986 = vadd.s32 %v981, %v985
    %v987 = vadd.s32 %v986, 536870912
    %v988 = vshrl.u32 %v987, 30
    %v989 = vshll.u32 %v988, 30
    %v990 = vsub.s32 %v986, %v989
    %vm991 = vcmp.lt.s32.totalorder %v990, 0
    %v992 = vsub.s32 0, %v990
    %v993 = vsel %vm991, %v992, %v990
    %v994 = vclz %v993
    %v995 = vsub.s32 %v994, 2
    %vm996 = vcmp.gt.s32.totalorder 0, %v995
    %v997 = vsel %vm996, 0, %v995
    %v998 = vsub.s32 32, %v997
    %v999 = vshll.u32 %v990, %v997
    %v1000 = vshrl.u32 %v982, %v998
    %v1001 = vor.u32 %v999, %v1000
    %v1002 = vsub.s32 4294967266, %v997
    %v1003 = vadd.s32 %v1002, 127
    %v1004 = vshll.u32 %v1003, 23
    %v1005 = vor.u32 4788187, %v1004
    %v1006 = vand.u32 2147483647, %v1005
    %v1008 = vcvt.s32.f32 %v1001
    %v1009 = vmul.f32 %v1008, %v1006
    %v1010 = vxor.u32 %v1009, 2147483648
    %v1011 = vsel %vm890, %v1010, %v1009
    %v1012 = vsub.s32 4, %v988
    %v1013 = vsel %vm890, %v1012, %v988
    %v1014 = vsel %vm889, %v208, %v1011
    %v1015 = vsel %vm889, 0, %v1013
    %v1016 = vmul.f32 %v1014, %v1014
    %v1017 = vmul.f32 %v1016, -0.001358992
    %v1018 = vadd.f32 %v1017, 0.041655596
    %v1019 = vmul.f32 %v1016, %v1018
    %v1020 = vadd.f32 %v1019, -0.4999988
    %v1021 = vmul.f32 %v1016, %v1020
    %v1022 = vadd.f32 1.0, %v1021
    %v1023 = vmul.f32 %v1014, %v1014
    %v1024 = vmul.f32 %v1023, -0.00019511016
    %v1025 = vadd.f32 %v1024, 0.008332121
    %v1026 = vmul.f32 %v1023, %v1025
    %v1027 = vadd.f32 %v1026, -0.16666654
    %v1028 = vmul.f32 %v1023, %v1027
    %v1029 = vadd.f32 %v1028, 1.0
    %v1030 = vmul.f32 %v1029, %v1014
    %vm1031 = vweird.f32 %v208
    %v1032 = vadd.s32 %v1015, 3
    %v1033 = vand.u32 %v1032, 3
    %vm1034 = vcmp.lt.s32.totalorder %v1033, 2
    %vm1035 = vcmp.eq.s32.totalorder %v1033, 0
    %v1036 = vxor.u32 %v1030, 2147483648
    %v1037 = vsel %vm1035, %v1022, %v1036
    %vm1038 = vcmp.eq.s32.totalorder %v1033, 2
    %v1039 = vxor.u32 %v1022, 2147483648
    %v1040 = vsel %vm1038, %v1039, %v1030
    %v1041 = vsel %vm1034, %v1037, %v1040
    %v1042 = vsel %vm1031, nan, %v1041
    %v1043 = vand.u32 2147483647, %v228
    %vm1044 = vcmp.le.f32.partialorder %v1043, 0.7853982
    %vm1045 = vcmp.lt.s32.totalorder %v228, 0
    %v1046 = vand.u32 %v228, 2139095040
    %v1047 = vshrl.u32 %v1046, 23
    %v1048 = vsub.s32 %v1047, 127
    %v1049 = vand.u32 2147483647, %v228
    %v1050 = vand.u32 %v1049, 8388607
    %v1051 = vor.u32 %v1050, 8388608
    %v1052 = vsub.s32 0, %v1051
    %v1053 = vadd.s32 %v1048, 1
    %vm1054 = vcmp.gt.s32.totalorder %v1053, 0
    %v1055 = vsel %vm1054, %v1053, 0
    %v1056 = vshrl.u32 %v1055, 5
    %v1057 = vand.u32 %v1055, 31
    %v1058 = vsub.s32 32, %v1057
    %v1059 = vshrl.u32 683565275, %v1058
    %v1060 = vshll.u32 683565275, %v1057
    %v1061 = vshrl.u32 2475754826, %v1058
    %v1062 = vor.u32 %v1060, %v1061
    %v1063 = vshll.u32 2475754826, %v1057
    %v1064 = vshrl.u32 2131351028, %v1058
    %v1065 = vor.u32 %v1063, %v1064
    %v1066 = vshll.u32 2131351028, %v1057
    %v1067 = vshrl.u32 2102212464, %v1058
    %v1068 = vor.u32 %v1066, %v1067
    %v1069 = vshll.u32 2102212464, %v1057
    %v1070 = vshrl.u32 920167782, %v1058
    %v1071 = vor.u32 %v1069, %v1070
    %v1072 = vshll.u32 920167782, %v1057
    %v1073 = vshrl.u32 1326507024, %v1058
    %v1074 = vor.u32 %v1072, %v1073
    %vm1075 = vcmp.lt.s32.totalorder %v1056, 1
    %vm1076 = vcmp.lt.s32.totalorder %v1056, 2
    %vm1077 = vcmp.lt.s32.totalorder %v1056, 3
    %vm1078 = vcmp.lt.s32.totalorder %v1056, 4
    %v1079 = vsel %vm1075, %v1059, %v1062
    %v1080 = vsel %vm1078, %v1068, 2102212464
    %v1081 = vsel %vm1077, %v1065, %v1080
    %v1082 = vsel %vm1076, %v1079, %v1081
    %v1083 = vsel %vm1075, %v1062, %v1065
    %v1084 = vsel %vm1078, %v1071, 920167782
    %v1085 = vsel %vm1077, %v1068, %v1084
    %v1086 = vsel %vm1076, %v1083, %v1085
    %v1087 = vsel %vm1075, %v1065, %v1068
    %v1088 = vsel %vm1078, %v1074, 1326507024
    %v1089 = vsel %vm1077, %v1071, %v1088
    %v1090 = vsel %vm1076, %v1087, %v1089
    %v1091 = vshll.u32 %v1051, 8
    %v1092 = vand.u32 %v1091, 65535
    %v1093 = vshrl.u32 %v1091, 16
    %v1094 = vand.u32 %v1090, 65535
    %v1095 = vshrl.u32 %v1090, 16
    %v1096 = vmul.u32 %v1092, %v1094
    %v1097 = vmul.u32 %v1092, %v1095
    %v1098 = vmul.u32 %v1093, %v1094
    %v1099 = vmul.u32 %v1093, %v1095
    %v1100 = vshll.u32 %v1097, 16
    %v1101 = vshrl.u32 %v1097, 16
    %v1102 = vshll.u32 %v1098, 16
    %v1103 = vshrl.u32 %v1098, 16
    %vm1104 = vc.u32 %v1096, %v1100
    %v1105 = vsel %vm1104, 1, 0
    %v1106 = vadd.s32 %v1096, %v1100
    %v1107 = vadd.s32 %v1099, %v1105
    %vm1108 = vc.u32 %v1106, %v1102
    %v1109 = vsel %vm1108, 1, 0
    %v1110 = vadd.s32 %v1106, %v1102
    %v1111 = vadd.s32 %v1107, %v1109
    %v1112 = vadd.s32 %v1111, %v1101
    %v1113 = vadd.s32 %v1112, %v1103
    %v1114 = vand.u32 %v1091, 65535
    %v1115 = vshrl.u32 %v1091, 16
    %v1116 = vand.u32 %v1086, 65535
    %v1117 = vshrl.u32 %v1086, 16
    %v1118 = vmul.u32 %v1114, %v1116
    %v1119 = vmul.u32 %v1114, %v1117
    %v1120 = vmul.u32 %v1115, %v1116
    %v1121 = vmul.u32 %v1115, %v1117
    %v1122 = vshll.u32 %v1119, 16
    %v1123 = vshrl.u32 %v1119, 16
    %v1124 = vshll.u32 %v1120, 16
    %v1125 = vshrl.u32 %v1120, 16
    %vm1126 = vc.u32 %v1118, %v1122
    %v1127 = vsel %vm1126, 1, 0
    %v1128 = vadd.s32 %v1118, %v1122
    %v1129 = vadd.s32 %v1121, %v1127
    %vm1130 = vc.u32 %v1128, %v1124
    %v1131 = vsel %vm1130, 1, 0
    %v1132 = vadd.s32 %v1128, %v1124
    %v1133 = vadd.s32 %v1129, %v1131
    %v1134 = vadd.s32 %v1133, %v1123
    %v1135 = vadd.s32 %v1134, %v1125
    %v1136 = vmul.u32 %v1091, %v1082
    %v1137 = vadd.s32 %v1113, %v1132
    %vm1138 = vc.u32 %v1113, %v1132
    %v1139 = vadd.s32 %v1135, 1
    %v1140 = vsel %vm1138, %v1139, %v1135
    %v1141 = vadd.s32 %v1136, %v1140
    %v1142 = vadd.s32 %v1141, 536870912
    %v1143 = vshrl.u32 %v1142, 30
    %v1144 = vshll.u32 %v1143, 30
    %v1145 = vsub.s32 %v1141, %v1144
    %vm1146 = vcmp.lt.s32.totalorder %v1145, 0
    %v1147 = vsub.s32 0, %v1145
    %v1148 = vsel %vm1146, %v1147, %v1145
    %v1149 = vclz %v1148
    %v1150 = vsub.s32 %v1149, 2
    %vm1151 = vcmp.gt.s32.totalorder 0, %v1150
    %v1152 = vsel %vm1151, 0, %v1150
    %v1153 = vsub.s32 32, %v1152
    %v1154 = vshll.u32 %v1145, %v1152
    %v1155 = vshrl.u32 %v1137, %v1153
    %v1156 = vor.u32 %v1154, %v1155
    %v1157 = vsub.s32 4294967266, %v1152
    %v1158 = vadd.s32 %v1157, 127
    %v1159 = vshll.u32 %v1158, 23
    %v1160 = vor.u32 4788187, %v1159
    %v1161 = vand.u32 2147483647, %v1160
    %v1163 = vcvt.s32.f32 %v1156
    %v1164 = vmul.f32 %v1163, %v1161
    %v1165 = vxor.u32 %v1164, 2147483648
    %v1166 = vsel %vm1045, %v1165, %v1164
    %v1167 = vsub.s32 4, %v1143
    %v1168 = vsel %vm1045, %v1167, %v1143
    %v1169 = vsel %vm1044, %v228, %v1166
    %v1170 = vsel %vm1044, 0, %v1168
    %v1171 = vmul.f32 %v1169, %v1169
    %v1172 = vmul.f32 %v1171, -0.001358992
    %v1173 = vadd.f32 %v1172, 0.041655596
    %v1174 = vmul.f32 %v1171, %v1173
    %v1175 = vadd.f32 %v1174, -0.4999988
    %v1176 = vmul.f32 %v1171, %v1175
    %v1177 = vadd.f32 1.0, %v1176
    %v1178 = vmul.f32 %v1169, %v1169
    %v1179 = vmul.f32 %v1178, -0.00019511016
    %v1180 = vadd.f32 %v1179, 0.008332121
    %v1181 = vmul.f32 %v1178, %v1180
    %v1182 = vadd.f32 %v1181, -0.16666654
    %v1183 = vmul.f32 %v1178, %v1182
    %v1184 = vadd.f32 %v1183, 1.0
    %v1185 = vmul.f32 %v1184, %v1169
    %vm1186 = vweird.f32 %v228
    %v1187 = vadd.s32 %v1170, 3
    %v1188 = vand.u32 %v1187, 3
    %vm1189 = vcmp.lt.s32.totalorder %v1188, 2
    %vm1190 = vcmp.eq.s32.totalorder %v1188, 0
    %v1191 = vxor.u32 %v1185, 2147483648
    %v1192 = vsel %vm1190, %v1177, %v1191
    %vm1193 = vcmp.eq.s32.totalorder %v1188, 2
    %v1194 = vxor.u32 %v1177, 2147483648
    %v1195 = vsel %vm1193, %v1194, %v1185
    %v1196 = vsel %vm1189, %v1192, %v1195
    %v1197 = vsel %vm1186, nan, %v1196
    %v1198 = vand.u32 2147483647, %v248
    %vm1199 = vcmp.le.f32.partialorder %v1198, 0.7853982
    %vm1200 = vcmp.lt.s32.totalorder %v248, 0
    %v1201 = vand.u32 %v248, 2139095040
    %v1202 = vshrl.u32 %v1201, 23
    %v1203 = vsub.s32 %v1202, 127
    %v1204 = vand.u32 2147483647, %v248
    %v1205 = vand.u32 %v1204, 8388607
    %v1206 = vor.u32 %v1205, 8388608
    %v1207 = vsub.s32 0, %v1206
    %v1208 = vadd.s32 %v1203, 1
    %vm1209 = vcmp.gt.s32.totalorder %v1208, 0
    %v1210 = vsel %vm1209, %v1208, 0
    %v1211 = vshrl.u32 %v1210, 5
    %v1212 = vand.u32 %v1210, 31
    %v1213 = vsub.s32 32, %v1212
    %v1214 = vshrl.u32 683565275, %v1213
    %v1215 = vshll.u32 683565275, %v1212
    %v1216 = vshrl.u32 2475754826, %v1213
    %v1217 = vor.u32 %v1215, %v1216
    %v1218 = vshll.u32 2475754826, %v1212
    %v1219 = vshrl.u32 2131351028, %v1213
    %v1220 = vor.u32 %v1218, %v1219
    %v1221 = vshll.u32 2131351028, %v1212
    %v1222 = vshrl.u32 2102212464, %v1213
    %v1223 = vor.u32 %v1221, %v1222
    %v1224 = vshll.u32 2102212464, %v1212
    %v1225 = vshrl.u32 920167782, %v1213
    %v1226 = vor.u32 %v1224, %v1225
    %v1227 = vshll.u32 920167782, %v1212
    %v1228 = vshrl.u32 1326507024, %v1213
    %v1229 = vor.u32 %v1227, %v1228
    %vm1230 = vcmp.lt.s32.totalorder %v1211, 1
    %vm1231 = vcmp.lt.s32.totalorder %v1211, 2
    %vm1232 = vcmp.lt.s32.totalorder %v1211, 3
    %vm1233 = vcmp.lt.s32.totalorder %v1211, 4
    %v1234 = vsel %vm1230, %v1214, %v1217
    %v1235 = vsel %vm1233, %v1223, 2102212464
    %v1236 = vsel %vm1232, %v1220, %v1235
    %v1237 = vsel %vm1231, %v1234, %v1236
    %v1238 = vsel %vm1230, %v1217, %v1220
    %v1239 = vsel %vm1233, %v1226, 920167782
    %v1240 = vsel %vm1232, %v1223, %v1239
    %v1241 = vsel %vm1231, %v1238, %v1240
    %v1242 = vsel %vm1230, %v1220, %v1223
    %v1243 = vsel %vm1233, %v1229, 1326507024
    %v1244 = vsel %vm1232, %v1226, %v1243
    %v1245 = vsel %vm1231, %v1242, %v1244
    %v1246 = vshll.u32 %v1206, 8
    %v1247 = vand.u32 %v1246, 65535
    %v1248 = vshrl.u32 %v1246, 16
    %v1249 = vand.u32 %v1245, 65535
    %v1250 = vshrl.u32 %v1245, 16
    %v1251 = vmul.u32 %v1247, %v1249
    %v1252 = vmul.u32 %v1247, %v1250
    %v1253 = vmul.u32 %v1248, %v1249
    %v1254 = vmul.u32 %v1248, %v1250
    %v1255 = vshll.u32 %v1252, 16
    %v1256 = vshrl.u32 %v1252, 16
    %v1257 = vshll.u32 %v1253, 16
    %v1258 = vshrl.u32 %v1253, 16
    %vm1259 = vc.u32 %v1251, %v1255
    %v1260 = vsel %vm1259, 1, 0
    %v1261 = vadd.s32 %v1251, %v1255
    %v1262 = vadd.s32 %v1254, %v1260
    %vm1263 = vc.u32 %v1261, %v1257
    %v1264 = vsel %vm1263, 1, 0
    %v1265 = vadd.s32 %v1261, %v1257
    %v1266 = vadd.s32 %v1262, %v1264
    %v1267 = vadd.s32 %v1266, %v1256
    %v1268 = vadd.s32 %v1267, %v1258
    %v1269 = vand.u32 %v1246, 65535
    %v1270 = vshrl.u32 %v1246, 16
    %v1271 = vand.u32 %v1241, 65535
    %v1272 = vshrl.u32 %v1241, 16
    %v1273 = vmul.u32 %v1269, %v1271
    %v1274 = vmul.u32 %v1269, %v1272
    %v1275 = vmul.u32 %v1270, %v1271
    %v1276 = vmul.u32 %v1270, %v1272
    %v1277 = vshll.u32 %v1274, 16
    %v1278 = vshrl.u32 %v1274, 16
    %v1279 = vshll.u32 %v1275, 16
    %v1280 = vshrl.u32 %v1275, 16
    %vm1281 = vc.u32 %v1273, %v1277
    %v1282 = vsel %vm1281, 1, 0
    %v1283 = vadd.s32 %v1273, %v1277
    %v1284 = vadd.s32 %v1276, %v1282
    %vm1285 = vc.u32 %v1283, %v1279
    %v1286 = vsel %vm1285, 1, 0
    %v1287 = vadd.s32 %v1283, %v1279
    %v1288 = vadd.s32 %v1284, %v1286
    %v1289 = vadd.s32 %v1288, %v1278
    %v1290 = vadd.s32 %v1289, %v1280
    %v1291 = vmul.u32 %v1246, %v1237
    %v1292 = vadd.s32 %v1268, %v1287
    %vm1293 = vc.u32 %v1268, %v1287
    %v1294 = vadd.s32 %v1290, 1
    %v1295 = vsel %vm1293, %v1294, %v1290
    %v1296 = vadd.s32 %v1291, %v1295
    %v1297 = vadd.s32 %v1296, 536870912
    %v1298 = vshrl.u32 %v1297, 30
    %v1299 = vshll.u32 %v1298, 30
    %v1300 = vsub.s32 %v1296, %v1299
    %vm1301 = vcmp.lt.s32.totalorder %v1300, 0
    %v1302 = vsub.s32 0, %v1300
    %v1303 = vsel %vm1301, %v1302, %v1300
    %v1304 = vclz %v1303
    %v1305 = vsub.s32 %v1304, 2
    %vm1306 = vcmp.gt.s32.totalorder 0, %v1305
    %v1307 = vsel %vm1306, 0, %v1305
    %v1308 = vsub.s32 32, %v1307
    %v1309 = vshll.u32 %v1300, %v1307
    %v1310 = vshrl.u32 %v1292, %v1308
    %v1311 = vor.u32 %v1309, %v1310
    %v1312 = vsub.s32 4294967266, %v1307
    %v1313 = vadd.s32 %v1312, 127
    %v1314 = vshll.u32 %v1313, 23
    %v1315 = vor.u32 4788187, %v1314
    %v1316 = vand.u32 2147483647, %v1315
    %v1318 = vcvt.s32.f32 %v1311
    %v1319 = vmul.f32 %v1318, %v1316
    %v1320 = vxor.u32 %v1319, 2147483648
    %v1321 = vsel %vm1200, %v1320, %v1319
    %v1322 = vsub.s32 4, %v1298
    %v1323 = vsel %vm1200, %v1322, %v1298
    %v1324 = vsel %vm1199, %v248, %v1321
    %v1325 = vsel %vm1199, 0, %v1323
    %v1326 = vmul.f32 %v1324, %v1324
    %v1327 = vmul.f32 %v1326, -0.001358992
    %v1328 = vadd.f32 %v1327, 0.041655596
    %v1329 = vmul.f32 %v1326, %v1328
    %v1330 = vadd.f32 %v1329, -0.4999988
    %v1331 = vmul.f32 %v1326, %v1330
    %v1332 = vadd.f32 1.0, %v1331
    %v1333 = vmul.f32 %v1324, %v1324
    %v1334 = vmul.f32 %v1333, -0.00019511016
    %v1335 = vadd.f32 %v1334, 0.008332121
    %v1336 = vmul.f32 %v1333, %v1335
    %v1337 = vadd.f32 %v1336, -0.16666654
    %v1338 = vmul.f32 %v1333, %v1337
    %v1339 = vadd.f32 %v1338, 1.0
    %v1340 = vmul.f32 %v1339, %v1324
    %vm1341 = vweird.f32 %v248
    %v1342 = vadd.s32 %v1325, 3
    %v1343 = vand.u32 %v1342, 3
    %vm1344 = vcmp.lt.s32.totalorder %v1343, 2
    %vm1345 = vcmp.eq.s32.totalorder %v1343, 0
    %v1346 = vxor.u32 %v1340, 2147483648
    %v1347 = vsel %vm1345, %v1332, %v1346
    %vm1348 = vcmp.eq.s32.totalorder %v1343, 2
    %v1349 = vxor.u32 %v1332, 2147483648
    %v1350 = vsel %vm1348, %v1349, %v1340
    %v1351 = vsel %vm1344, %v1347, %v1350
    %v1352 = vsel %vm1341, nan, %v1351
    %v1353 = vand.u32 2147483647, %v268
    %vm1354 = vcmp.le.f32.partialorder %v1353, 0.7853982
    %vm1355 = vcmp.lt.s32.totalorder %v268, 0
    %v1356 = vand.u32 %v268, 2139095040
    %v1357 = vshrl.u32 %v1356, 23
    %v1358 = vsub.s32 %v1357, 127
    %v1359 = vand.u32 2147483647, %v268
    %v1360 = vand.u32 %v1359, 8388607
    %v1361 = vor.u32 %v1360, 8388608
    %v1362 = vsub.s32 0, %v1361
    %v1363 = vadd.s32 %v1358, 1
    %vm1364 = vcmp.gt.s32.totalorder %v1363, 0
    %v1365 = vsel %vm1364, %v1363, 0
    %v1366 = vshrl.u32 %v1365, 5
    %v1367 = vand.u32 %v1365, 31
    %v1368 = vsub.s32 32, %v1367
    %v1369 = vshrl.u32 683565275, %v1368
    %v1370 = vshll.u32 683565275, %v1367
    %v1371 = vshrl.u32 2475754826, %v1368
    %v1372 = vor.u32 %v1370, %v1371
    %v1373 = vshll.u32 2475754826, %v1367
    %v1374 = vshrl.u32 2131351028, %v1368
    %v1375 = vor.u32 %v1373, %v1374
    %v1376 = vshll.u32 2131351028, %v1367
    %v1377 = vshrl.u32 2102212464, %v1368
    %v1378 = vor.u32 %v1376, %v1377
    %v1379 = vshll.u32 2102212464, %v1367
    %v1380 = vshrl.u32 920167782, %v1368
    %v1381 = vor.u32 %v1379, %v1380
    %v1382 = vshll.u32 920167782, %v1367
    %v1383 = vshrl.u32 1326507024, %v1368
    %v1384 = vor.u32 %v1382, %v1383
    %vm1385 = vcmp.lt.s32.totalorder %v1366, 1
    %vm1386 = vcmp.lt.s32.totalorder %v1366, 2
    %vm1387 = vcmp.lt.s32.totalorder %v1366, 3
    %vm1388 = vcmp.lt.s32.totalorder %v1366, 4
    %v1389 = vsel %vm1385, %v1369, %v1372
    %v1390 = vsel %vm1388, %v1378, 2102212464
    %v1391 = vsel %vm1387, %v1375, %v1390
    %v1392 = vsel %vm1386, %v1389, %v1391
    %v1393 = vsel %vm1385, %v1372, %v1375
    %v1394 = vsel %vm1388, %v1381, 920167782
    %v1395 = vsel %vm1387, %v1378, %v1394
    %v1396 = vsel %vm1386, %v1393, %v1395
    %v1397 = vsel %vm1385, %v1375, %v1378
    %v1398 = vsel %vm1388, %v1384, 1326507024
    %v1399 = vsel %vm1387, %v1381, %v1398
    %v1400 = vsel %vm1386, %v1397, %v1399
    %v1401 = vshll.u32 %v1361, 8
    %v1402 = vand.u32 %v1401, 65535
    %v1403 = vshrl.u32 %v1401, 16
    %v1404 = vand.u32 %v1400, 65535
    %v1405 = vshrl.u32 %v1400, 16
    %v1406 = vmul.u32 %v1402, %v1404
    %v1407 = vmul.u32 %v1402, %v1405
    %v1408 = vmul.u32 %v1403, %v1404
    %v1409 = vmul.u32 %v1403, %v1405
    %v1410 = vshll.u32 %v1407, 16
    %v1411 = vshrl.u32 %v1407, 16
    %v1412 = vshll.u32 %v1408, 16
    %v1413 = vshrl.u32 %v1408, 16
    %vm1414 = vc.u32 %v1406, %v1410
    %v1415 = vsel %vm1414, 1, 0
    %v1416 = vadd.s32 %v1406, %v1410
    %v1417 = vadd.s32 %v1409, %v1415
    %vm1418 = vc.u32 %v1416, %v1412
    %v1419 = vsel %vm1418, 1, 0
    %v1420 = vadd.s32 %v1416, %v1412
    %v1421 = vadd.s32 %v1417, %v1419
    %v1422 = vadd.s32 %v1421, %v1411
    %v1423 = vadd.s32 %v1422, %v1413
    %v1424 = vand.u32 %v1401, 65535
    %v1425 = vshrl.u32 %v1401, 16
    %v1426 = vand.u32 %v1396, 65535
    %v1427 = vshrl.u32 %v1396, 16
    %v1428 = vmul.u32 %v1424, %v1426
    %v1429 = vmul.u32 %v1424, %v1427
    %v1430 = vmul.u32 %v1425, %v1426
    %v1431 = vmul.u32 %v1425, %v1427
    %v1432 = vshll.u32 %v1429, 16
    %v1433 = vshrl.u32 %v1429, 16
    %v1434 = vshll.u32 %v1430, 16
    %v1435 = vshrl.u32 %v1430, 16
    %vm1436 = vc.u32 %v1428, %v1432
    %v1437 = vsel %vm1436, 1, 0
    %v1438 = vadd.s32 %v1428, %v1432
    %v1439 = vadd.s32 %v1431, %v1437
    %vm1440 = vc.u32 %v1438, %v1434
    %v1441 = vsel %vm1440, 1, 0
    %v1442 = vadd.s32 %v1438, %v1434
    %v1443 = vadd.s32 %v1439, %v1441
    %v1444 = vadd.s32 %v1443, %v1433
    %v1445 = vadd.s32 %v1444, %v1435
    %v1446 = vmul.u32 %v1401, %v1392
    %v1447 = vadd.s32 %v1423, %v1442
    %vm1448 = vc.u32 %v1423, %v1442
    %v1449 = vadd.s32 %v1445, 1
    %v1450 = vsel %vm1448, %v1449, %v1445
    %v1451 = vadd.s32 %v1446, %v1450
    %v1452 = vadd.s32 %v1451, 536870912
    %v1453 = vshrl.u32 %v1452, 30
    %v1454 = vshll.u32 %v1453, 30
    %v1455 = vsub.s32 %v1451, %v1454
    %vm1456 = vcmp.lt.s32.totalorder %v1455, 0
    %v1457 = vsub.s32 0, %v1455
    %v1458 = vsel %vm1456, %v1457, %v1455
    %v1459 = vclz %v1458
    %v1460 = vsub.s32 %v1459, 2
    %vm1461 = vcmp.gt.s32.totalorder 0, %v1460
    %v1462 = vsel %vm1461, 0, %v1460
    %v1463 = vsub.s32 32, %v1462
    %v1464 = vshll.u32 %v1455, %v1462
    %v1465 = vshrl.u32 %v1447, %v1463
    %v1466 = vor.u32 %v1464, %v1465
    %v1467 = vsub.s32 4294967266, %v1462
    %v1468 = vadd.s32 %v1467, 127
    %v1469 = vshll.u32 %v1468, 23
    %v1470 = vor.u32 4788187, %v1469
    %v1471 = vand.u32 2147483647, %v1470
    %v1473 = vcvt.s32.f32 %v1466
    %v1474 = vmul.f32 %v1473, %v1471
    %v1475 = vxor.u32 %v1474, 2147483648
    %v1476 = vsel %vm1355, %v1475, %v1474
    %v1477 = vsub.s32 4, %v1453
    %v1478 = vsel %vm1355, %v1477, %v1453
    %v1479 = vsel %vm1354, %v268, %v1476
    %v1480 = vsel %vm1354, 0, %v1478
    %v1481 = vmul.f32 %v1479, %v1479
    %v1482 = vmul.f32 %v1481, -0.001358992
    %v1483 = vadd.f32 %v1482, 0.041655596
    %v1484 = vmul.f32 %v1481, %v1483
    %v1485 = vadd.f32 %v1484, -0.4999988
    %v1486 = vmul.f32 %v1481, %v1485
    %v1487 = vadd.f32 1.0, %v1486
    %v1488 = vmul.f32 %v1479, %v1479
    %v1489 = vmul.f32 %v1488, -0.00019511016
    %v1490 = vadd.f32 %v1489, 0.008332121
    %v1491 = vmul.f32 %v1488, %v1490
    %v1492 = vadd.f32 %v1491, -0.16666654
    %v1493 = vmul.f32 %v1488, %v1492
    %v1494 = vadd.f32 %v1493, 1.0
    %v1495 = vmul.f32 %v1494, %v1479
    %vm1496 = vweird.f32 %v268
    %v1497 = vadd.s32 %v1480, 3
    %v1498 = vand.u32 %v1497, 3
    %vm1499 = vcmp.lt.s32.totalorder %v1498, 2
    %vm1500 = vcmp.eq.s32.totalorder %v1498, 0
    %v1501 = vxor.u32 %v1495, 2147483648
    %v1502 = vsel %vm1500, %v1487, %v1501
    %vm1503 = vcmp.eq.s32.totalorder %v1498, 2
    %v1504 = vxor.u32 %v1487, 2147483648
    %v1505 = vsel %vm1503, %v1504, %v1495
    %v1506 = vsel %vm1499, %v1502, %v1505
    %v1507 = vsel %vm1496, nan, %v1506
    %v1508 = vpack.c.bf16 %v1197, %v1042
    %v1509 = vpack.c.bf16 %v1507, %v1352
    %v1510 = vld [vmem:[#allocation4] sm:$0xff]
    %v1511 = vld [vmem:[#allocation4 + $0x8] sm:$0xff]
    %v1512 = vld [vmem:[#allocation4 + $0x10] sm:$0xff]
    %v1513 = vld [vmem:[#allocation4 + $0x18] sm:$0xff]
    %v1514 = vld [vmem:[#allocation4 + $0x20] sm:$0xff]
    %v1515 = vld [vmem:[#allocation4 + $0x28] sm:$0xff]
    %v1516 = vld [vmem:[#allocation4 + $0x30] sm:$0xff]
    %v1517 = vld [vmem:[#allocation4 + $0x38] sm:$0xff]
    %v1518 = vld [vmem:[#allocation4 + $0x40] sm:$0xff]
    %v1519 = vld [vmem:[#allocation4 + $0x48] sm:$0xff]
    %v1520 = vld [vmem:[#allocation4 + $0x50] sm:$0xff]
    %v1521 = vld [vmem:[#allocation4 + $0x58] sm:$0xff]
    %v1522 = vld [vmem:[#allocation4 + $0x60] sm:$0xff]
    %v1523 = vld [vmem:[#allocation4 + $0x68] sm:$0xff]
    %v1524 = vld [vmem:[#allocation4 + $0x70] sm:$0xff]
    %v1525 = vld [vmem:[#allocation4 + $0x78] sm:$0xff]
    %v1526 = vld [vmem:[#allocation6] sm:$0xff]
    %v1527 = vld [vmem:[#allocation6 + $0x8] sm:$0xff]
    %v1528 = vld [vmem:[#allocation6 + $0x10] sm:$0xff]
    %v1529 = vld [vmem:[#allocation6 + $0x18] sm:$0xff]
    %v1530 = vld [vmem:[#allocation6 + $0x20] sm:$0xff]
    %v1531 = vld [vmem:[#allocation6 + $0x28] sm:$0xff]
    %v1532 = vld [vmem:[#allocation6 + $0x30] sm:$0xff]
    %v1533 = vld [vmem:[#allocation6 + $0x38] sm:$0xff]
    %v1534 = vld [vmem:[#allocation6 + $0x40] sm:$0xff]
    %v1535 = vld [vmem:[#allocation6 + $0x48] sm:$0xff]
    %v1536 = vld [vmem:[#allocation6 + $0x50] sm:$0xff]
    %v1537 = vld [vmem:[#allocation6 + $0x58] sm:$0xff]
    %v1538 = vld [vmem:[#allocation6 + $0x60] sm:$0xff]
    %v1539 = vld [vmem:[#allocation6 + $0x68] sm:$0xff]
    %v1540 = vld [vmem:[#allocation6 + $0x70] sm:$0xff]
    %v1541 = vld [vmem:[#allocation6 + $0x78] sm:$0xff]
    %v1558 = vunpack.c.l.b16 %v1526
    %v1559 = vunpack.c.h.b16 %v1526
    %v1560 = vunpack.c.l.b16 %v1527
    %v1561 = vunpack.c.h.b16 %v1527
    %v1562 = vunpack.c.l.b16 %v1528
    %v1563 = vunpack.c.h.b16 %v1528
    %v1564 = vunpack.c.l.b16 %v1529
    %v1565 = vunpack.c.h.b16 %v1529
    %v1566 = vunpack.c.l.b16 %v1530
    %v1567 = vunpack.c.h.b16 %v1530
    %v1568 = vunpack.c.l.b16 %v1531
    %v1569 = vunpack.c.h.b16 %v1531
    %v1570 = vunpack.c.l.b16 %v1532
    %v1571 = vunpack.c.h.b16 %v1532
    %v1572 = vunpack.c.l.b16 %v1533
    %v1573 = vunpack.c.h.b16 %v1533
    %v1574 = vunpack.c.l.b16 %v1534
    %v1575 = vunpack.c.h.b16 %v1534
    %v1576 = vunpack.c.l.b16 %v1535
    %v1577 = vunpack.c.h.b16 %v1535
    %v1578 = vunpack.c.l.b16 %v1536
    %v1579 = vunpack.c.h.b16 %v1536
    %v1580 = vunpack.c.l.b16 %v1537
    %v1581 = vunpack.c.h.b16 %v1537
    %v1582 = vunpack.c.l.b16 %v1538
    %v1583 = vunpack.c.h.b16 %v1538
    %v1584 = vunpack.c.l.b16 %v1539
    %v1585 = vunpack.c.h.b16 %v1539
    %v1586 = vunpack.c.l.b16 %v1540
    %v1587 = vunpack.c.h.b16 %v1540
    %v1588 = vunpack.c.l.b16 %v1541
    %v1589 = vunpack.c.h.b16 %v1541
    %v1590 = vpack.c.b16 %v1560, %v1558
    %v1591 = vpack.c.b16 %v1561, %v1559
    %v1592 = vpack.c.b16 %v1564, %v1562
    %v1593 = vpack.c.b16 %v1565, %v1563
    %v1594 = vpack.c.b16 %v1568, %v1566
    %v1595 = vpack.c.b16 %v1569, %v1567
    %v1596 = vpack.c.b16 %v1572, %v1570
    %v1597 = vpack.c.b16 %v1573, %v1571
    %v1598 = vpack.c.b16 %v1576, %v1574
    %v1599 = vpack.c.b16 %v1577, %v1575
    %v1600 = vpack.c.b16 %v1580, %v1578
    %v1601 = vpack.c.b16 %v1581, %v1579
    %v1602 = vpack.c.b16 %v1584, %v1582
    %v1603 = vpack.c.b16 %v1585, %v1583
    %v1604 = vpack.c.b16 %v1588, %v1586
    %v1605 = vpack.c.b16 %v1589, %v1587
    %1622 = vmatpush.bf16.msra.mxu0 %v1604
    %1623 = vmatpush.bf16.msra.mxu0 %v1602
    %1624 = vmatpush.bf16.msra.mxu0 %v1600
    %1625 = vmatpush.bf16.msra.mxu0 %v1598
    %1626 = vmatpush.bf16.msra.mxu0 %v1596
    %1627 = vmatpush.bf16.msra.mxu0 %v1594
    %1628 = vmatpush.bf16.msra.mxu0 %v1592
    %1629 = vmatpush.bf16.msra.mxu0 %v1590
    %1630 = vmatmul.bf16.gmra.mxu0 %v1508
    %v1631 = vpop.f32.mrf.mxu0
    %v1632 = vadd.f32 0.0, %v1631
    %v1633 = vpop.f32.mrf.mxu0
    %1634 = vdwg.mxu0
    %1635 = vmatpush.bf16.msra.mxu0 %v1605
    %1636 = vmatpush.bf16.msra.mxu0 %v1603
    %1637 = vmatpush.bf16.msra.mxu0 %v1601
    %1638 = vmatpush.bf16.msra.mxu0 %v1599
    %1639 = vmatpush.bf16.msra.mxu0 %v1597
    %1640 = vmatpush.bf16.msra.mxu0 %v1595
    %1641 = vmatpush.bf16.msra.mxu0 %v1593
    %1642 = vmatpush.bf16.msra.mxu0 %v1591
    %1643 = vmatmul.bf16.gmra.mxu0 %v1508
    %v1644 = vpop.f32.mrf.mxu0
    %v1645 = vadd.f32 0.0, %v1644
    %v1646 = vpop.f32.mrf.mxu0
    %1647 = vdwg.mxu0
    %v1664 = vunpack.c.l.b16 %v1510
    %v1665 = vunpack.c.h.b16 %v1510
    %v1666 = vunpack.c.l.b16 %v1511
    %v1667 = vunpack.c.h.b16 %v1511
    %v1668 = vunpack.c.l.b16 %v1512
    %v1669 = vunpack.c.h.b16 %v1512
    %v1670 = vunpack.c.l.b16 %v1513
    %v1671 = vunpack.c.h.b16 %v1513
    %v1672 = vunpack.c.l.b16 %v1514
    %v1673 = vunpack.c.h.b16 %v1514
    %v1674 = vunpack.c.l.b16 %v1515
    %v1675 = vunpack.c.h.b16 %v1515
    %v1676 = vunpack.c.l.b16 %v1516
    %v1677 = vunpack.c.h.b16 %v1516
    %v1678 = vunpack.c.l.b16 %v1517
    %v1679 = vunpack.c.h.b16 %v1517
    %v1680 = vunpack.c.l.b16 %v1518
    %v1681 = vunpack.c.h.b16 %v1518
    %v1682 = vunpack.c.l.b16 %v1519
    %v1683 = vunpack.c.h.b16 %v1519
    %v1684 = vunpack.c.l.b16 %v1520
    %v1685 = vunpack.c.h.b16 %v1520
    %v1686 = vunpack.c.l.b16 %v1521
    %v1687 = vunpack.c.h.b16 %v1521
    %v1688 = vunpack.c.l.b16 %v1522
    %v1689 = vunpack.c.h.b16 %v1522
    %v1690 = vunpack.c.l.b16 %v1523
    %v1691 = vunpack.c.h.b16 %v1523
    %v1692 = vunpack.c.l.b16 %v1524
    %v1693 = vunpack.c.h.b16 %v1524
    %v1694 = vunpack.c.l.b16 %v1525
    %v1695 = vunpack.c.h.b16 %v1525
    %v1696 = vpack.c.b16 %v1666, %v1664
    %v1697 = vpack.c.b16 %v1667, %v1665
    %v1698 = vpack.c.b16 %v1670, %v1668
    %v1699 = vpack.c.b16 %v1671, %v1669
    %v1700 = vpack.c.b16 %v1674, %v1672
    %v1701 = vpack.c.b16 %v1675, %v1673
    %v1702 = vpack.c.b16 %v1678, %v1676
    %v1703 = vpack.c.b16 %v1679, %v1677
    %v1704 = vpack.c.b16 %v1682, %v1680
    %v1705 = vpack.c.b16 %v1683, %v1681
    %v1706 = vpack.c.b16 %v1686, %v1684
    %v1707 = vpack.c.b16 %v1687, %v1685
    %v1708 = vpack.c.b16 %v1690, %v1688
    %v1709 = vpack.c.b16 %v1691, %v1689
    %v1710 = vpack.c.b16 %v1694, %v1692
    %v1711 = vpack.c.b16 %v1695, %v1693
    %1728 = vmatpush.bf16.msra.mxu0 %v1710
    %1729 = vmatpush.bf16.msra.mxu0 %v1708
    %1730 = vmatpush.bf16.msra.mxu0 %v1706
    %1731 = vmatpush.bf16.msra.mxu0 %v1704
    %1732 = vmatpush.bf16.msra.mxu0 %v1702
    %1733 = vmatpush.bf16.msra.mxu0 %v1700
    %1734 = vmatpush.bf16.msra.mxu0 %v1698
    %1735 = vmatpush.bf16.msra.mxu0 %v1696
    %1736 = vmatmul.bf16.gmra.mxu0 %v886
    %v1737 = vpop.f32.mrf.mxu0
    %v1738 = vadd.f32 %v1632, %v1737
    %v1739 = vpop.f32.mrf.mxu0
    %1740 = vdwg.mxu0
    %1741 = vmatpush.bf16.msra.mxu0 %v1711
    %1742 = vmatpush.bf16.msra.mxu0 %v1709
    %1743 = vmatpush.bf16.msra.mxu0 %v1707
    %1744 = vmatpush.bf16.msra.mxu0 %v1705
    %1745 = vmatpush.bf16.msra.mxu0 %v1703
    %1746 = vmatpush.bf16.msra.mxu0 %v1701
    %1747 = vmatpush.bf16.msra.mxu0 %v1699
    %1748 = vmatpush.bf16.msra.mxu0 %v1697
    %1749 = vmatmul.bf16.gmra.mxu0 %v886
    %v1750 = vpop.f32.mrf.mxu0
    %v1751 = vadd.f32 %v1645, %v1750
    %v1752 = vpop.f32.mrf.mxu0
    %1753 = vdwg.mxu0
    %v1755 = vunpack.c.h.b16 %v1508
    %v1756 = vpack.c.b16 %v1755, %v1755
    %1758 = vmatpush.bf16.msra.mxu0 %v1604
    %1759 = vmatpush.bf16.msra.mxu0 %v1602
    %1760 = vmatpush.bf16.msra.mxu0 %v1600
    %1761 = vmatpush.bf16.msra.mxu0 %v1598
    %1762 = vmatpush.bf16.msra.mxu0 %v1596
    %1763 = vmatpush.bf16.msra.mxu0 %v1594
    %1764 = vmatpush.bf16.msra.mxu0 %v1592
    %1765 = vmatpush.bf16.msra.mxu0 %v1590
    %1766 = vmatmul.bf16.gmra.mxu0 %v1756
    %v1767 = vpop.f32.mrf.mxu0
    %v1768 = vadd.f32 0.0, %v1767
    %v1769 = vpop.f32.mrf.mxu0
    %1770 = vdwg.mxu0
    %1771 = vmatpush.bf16.msra.mxu0 %v1605
    %1772 = vmatpush.bf16.msra.mxu0 %v1603
    %1773 = vmatpush.bf16.msra.mxu0 %v1601
    %1774 = vmatpush.bf16.msra.mxu0 %v1599
    %1775 = vmatpush.bf16.msra.mxu0 %v1597
    %1776 = vmatpush.bf16.msra.mxu0 %v1595
    %1777 = vmatpush.bf16.msra.mxu0 %v1593
    %1778 = vmatpush.bf16.msra.mxu0 %v1591
    %1779 = vmatmul.bf16.gmra.mxu0 %v1756
    %v1780 = vpop.f32.mrf.mxu0
    %v1781 = vadd.f32 0.0, %v1780
    %v1782 = vpop.f32.mrf.mxu0
    %1783 = vdwg.mxu0
    %v1785 = vunpack.c.h.b16 %v886
    %v1786 = vpack.c.b16 %v1785, %v1785
    %1788 = vmatpush.bf16.msra.mxu0 %v1710
    %1789 = vmatpush.bf16.msra.mxu0 %v1708
    %1790 = vmatpush.bf16.msra.mxu0 %v1706
    %1791 = vmatpush.bf16.msra.mxu0 %v1704
    %1792 = vmatpush.bf16.msra.mxu0 %v1702
    %1793 = vmatpush.bf16.msra.mxu0 %v1700
    %1794 = vmatpush.bf16.msra.mxu0 %v1698
    %1795 = vmatpush.bf16.msra.mxu0 %v1696
    %1796 = vmatmul.bf16.gmra.mxu0 %v1786
    %v1797 = vpop.f32.mrf.mxu0
    %v1798 = vadd.f32 %v1768, %v1797
    %v1799 = vpop.f32.mrf.mxu0
    %1800 = vdwg.mxu0
    %1801 = vmatpush.bf16.msra.mxu0 %v1711
    %1802 = vmatpush.bf16.msra.mxu0 %v1709
    %1803 = vmatpush.bf16.msra.mxu0 %v1707
    %1804 = vmatpush.bf16.msra.mxu0 %v1705
    %1805 = vmatpush.bf16.msra.mxu0 %v1703
    %1806 = vmatpush.bf16.msra.mxu0 %v1701
    %1807 = vmatpush.bf16.msra.mxu0 %v1699
    %1808 = vmatpush.bf16.msra.mxu0 %v1697
    %1809 = vmatmul.bf16.gmra.mxu0 %v1786
    %v1810 = vpop.f32.mrf.mxu0
    %v1811 = vadd.f32 %v1781, %v1810
    %v1812 = vpop.f32.mrf.mxu0
    %1813 = vdwg.mxu0
    %1814 = vmatpush.bf16.msra.mxu0 %v1604
    %1815 = vmatpush.bf16.msra.mxu0 %v1602
    %1816 = vmatpush.bf16.msra.mxu0 %v1600
    %1817 = vmatpush.bf16.msra.mxu0 %v1598
    %1818 = vmatpush.bf16.msra.mxu0 %v1596
    %1819 = vmatpush.bf16.msra.mxu0 %v1594
    %1820 = vmatpush.bf16.msra.mxu0 %v1592
    %1821 = vmatpush.bf16.msra.mxu0 %v1590
    %1822 = vmatmul.bf16.gmra.mxu0 %v1509
    %v1823 = vpop.f32.mrf.mxu0
    %v1824 = vadd.f32 0.0, %v1823
    %v1825 = vpop.f32.mrf.mxu0
    %1826 = vdwg.mxu0
    %1827 = vmatpush.bf16.msra.mxu0 %v1605
    %1828 = vmatpush.bf16.msra.mxu0 %v1603
    %1829 = vmatpush.bf16.msra.mxu0 %v1601
    %1830 = vmatpush.bf16.msra.mxu0 %v1599
    %1831 = vmatpush.bf16.msra.mxu0 %v1597
    %1832 = vmatpush.bf16.msra.mxu0 %v1595
    %1833 = vmatpush.bf16.msra.mxu0 %v1593
    %1834 = vmatpush.bf16.msra.mxu0 %v1591
    %1835 = vmatmul.bf16.gmra.mxu0 %v1509
    %v1836 = vpop.f32.mrf.mxu0
    %v1837 = vadd.f32 0.0, %v1836
    %v1838 = vpop.f32.mrf.mxu0
    %1839 = vdwg.mxu0
    %1840 = vmatpush.bf16.msra.mxu0 %v1710
    %1841 = vmatpush.bf16.msra.mxu0 %v1708
    %1842 = vmatpush.bf16.msra.mxu0 %v1706
    %1843 = vmatpush.bf16.msra.mxu0 %v1704
    %1844 = vmatpush.bf16.msra.mxu0 %v1702
    %1845 = vmatpush.bf16.msra.mxu0 %v1700
    %1846 = vmatpush.bf16.msra.mxu0 %v1698
    %1847 = vmatpush.bf16.msra.mxu0 %v1696
    %1848 = vmatmul.bf16.gmra.mxu0 %v887
    %v1849 = vpop.f32.mrf.mxu0
    %v1850 = vadd.f32 %v1824, %v1849
    %v1851 = vpop.f32.mrf.mxu0
    %1852 = vdwg.mxu0
    %1853 = vmatpush.bf16.msra.mxu0 %v1711
    %1854 = vmatpush.bf16.msra.mxu0 %v1709
    %1855 = vmatpush.bf16.msra.mxu0 %v1707
    %1856 = vmatpush.bf16.msra.mxu0 %v1705
    %1857 = vmatpush.bf16.msra.mxu0 %v1703
    %1858 = vmatpush.bf16.msra.mxu0 %v1701
    %1859 = vmatpush.bf16.msra.mxu0 %v1699
    %1860 = vmatpush.bf16.msra.mxu0 %v1697
    %1861 = vmatmul.bf16.gmra.mxu0 %v887
    %v1862 = vpop.f32.mrf.mxu0
    %v1863 = vadd.f32 %v1837, %v1862
    %v1864 = vpop.f32.mrf.mxu0
    %1865 = vdwg.mxu0
    %v1867 = vunpack.c.h.b16 %v1509
    %v1868 = vpack.c.b16 %v1867, %v1867
    %1870 = vmatpush.bf16.msra.mxu0 %v1604
    %1871 = vmatpush.bf16.msra.mxu0 %v1602
    %1872 = vmatpush.bf16.msra.mxu0 %v1600
    %1873 = vmatpush.bf16.msra.mxu0 %v1598
    %1874 = vmatpush.bf16.msra.mxu0 %v1596
    %1875 = vmatpush.bf16.msra.mxu0 %v1594
    %1876 = vmatpush.bf16.msra.mxu0 %v1592
    %1877 = vmatpush.bf16.msra.mxu0 %v1590
    %1878 = vmatmul.bf16.gmra.mxu0 %v1868
    %v1879 = vpop.f32.mrf.mxu0
    %v1880 = vadd.f32 0.0, %v1879
    %v1881 = vpop.f32.mrf.mxu0
    %1882 = vdwg.mxu0
    %1883 = vmatpush.bf16.msra.mxu0 %v1605
    %1884 = vmatpush.bf16.msra.mxu0 %v1603
    %1885 = vmatpush.bf16.msra.mxu0 %v1601
    %1886 = vmatpush.bf16.msra.mxu0 %v1599
    %1887 = vmatpush.bf16.msra.mxu0 %v1597
    %1888 = vmatpush.bf16.msra.mxu0 %v1595
    %1889 = vmatpush.bf16.msra.mxu0 %v1593
    %1890 = vmatpush.bf16.msra.mxu0 %v1591
    %1891 = vmatmul.bf16.gmra.mxu0 %v1868
    %v1892 = vpop.f32.mrf.mxu0
    %v1893 = vadd.f32 0.0, %v1892
    %v1894 = vpop.f32.mrf.mxu0
    %1895 = vdwg.mxu0
    %v1897 = vunpack.c.h.b16 %v887
    %v1898 = vpack.c.b16 %v1897, %v1897
    %1900 = vmatpush.bf16.msra.mxu0 %v1710
    %1901 = vmatpush.bf16.msra.mxu0 %v1708
    %1902 = vmatpush.bf16.msra.mxu0 %v1706
    %1903 = vmatpush.bf16.msra.mxu0 %v1704
    %1904 = vmatpush.bf16.msra.mxu0 %v1702
    %1905 = vmatpush.bf16.msra.mxu0 %v1700
    %1906 = vmatpush.bf16.msra.mxu0 %v1698
    %1907 = vmatpush.bf16.msra.mxu0 %v1696
    %1908 = vmatmul.bf16.gmra.mxu0 %v1898
    %v1909 = vpop.f32.mrf.mxu0
    %v1910 = vadd.f32 %v1880, %v1909
    %v1911 = vpop.f32.mrf.mxu0
    %1912 = vdwg.mxu0
    %1913 = vmatpush.bf16.msra.mxu0 %v1711
    %1914 = vmatpush.bf16.msra.mxu0 %v1709
    %1915 = vmatpush.bf16.msra.mxu0 %v1707
    %1916 = vmatpush.bf16.msra.mxu0 %v1705
    %1917 = vmatpush.bf16.msra.mxu0 %v1703
    %1918 = vmatpush.bf16.msra.mxu0 %v1701
    %1919 = vmatpush.bf16.msra.mxu0 %v1699
    %1920 = vmatpush.bf16.msra.mxu0 %v1697
    %1921 = vmatmul.bf16.gmra.mxu0 %v1898
    %v1922 = vpop.f32.mrf.mxu0
    %v1923 = vadd.f32 %v1893, %v1922
    %v1924 = vpop.f32.mrf.mxu0
    %1925 = vdwg.mxu0
    %v1926 = vld [vmem:[%s4] sm:$0xff]
    %v1928 = vperm.slane %v1926, 0
    %v1929 = vperm.slane %v1926, 1
    %v1930 = vperm.slane %v1926, 2
    %v1931 = vperm.slane %v1926, 3
    %v1932 = vperm.slane %v1926, 4
    %v1933 = vperm.slane %v1926, 5
    %v1934 = vperm.slane %v1926, 6
    %v1935 = vperm.slane %v1926, 7
    %v1944 = vadd.f32 %v1738, %v1928
    %v1945 = vadd.f32 %v1751, %v1929
    %v1946 = vadd.f32 %v1798, %v1930
    %v1947 = vadd.f32 %v1811, %v1931
    %v1948 = vadd.f32 %v1850, %v1932
    %v1949 = vadd.f32 %v1863, %v1933
    %v1950 = vadd.f32 %v1910, %v1934
    %v1951 = vadd.f32 %v1923, %v1935
    %v1952 = vmax.f32 %v1944, 0.0
    %v1953 = vmax.f32 %v1945, 0.0
    %v1954 = vmax.f32 %v1946, 0.0
    %v1955 = vmax.f32 %v1947, 0.0
    %v1956 = vmax.f32 %v1948, 0.0
    %v1957 = vmax.f32 %v1949, 0.0
    %v1958 = vmax.f32 %v1950, 0.0
    %v1959 = vmax.f32 %v1951, 0.0
    %v1960 = vld [vmem:[#allocation7] sm:$0xf]
    %v1961 = vld [vmem:[#allocation7 + $0x4] sm:$0xf]
    %v1962 = vld [vmem:[#allocation7 + $0x8] sm:$0xf]
    %v1963 = vld [vmem:[#allocation7 + $0xc] sm:$0xf]
    %v1964 = vld [vmem:[#allocation7 + $0x10] sm:$0xf]
    %v1965 = vld [vmem:[#allocation7 + $0x14] sm:$0xf]
    %v1966 = vld [vmem:[#allocation7 + $0x18] sm:$0xf]
    %v1967 = vld [vmem:[#allocation7 + $0x1c] sm:$0xf]
    %v1968 = vld [vmem:[#allocation7 + $0x20] sm:$0xf]
    %v1969 = vld [vmem:[#allocation7 + $0x24] sm:$0xf]
    %v1970 = vld [vmem:[#allocation7 + $0x28] sm:$0xf]
    %v1971 = vld [vmem:[#allocation7 + $0x2c] sm:$0xf]
    %v1972 = vld [vmem:[#allocation7 + $0x30] sm:$0xf]
    %v1973 = vld [vmem:[#allocation7 + $0x34] sm:$0xf]
    %v1974 = vld [vmem:[#allocation7 + $0x38] sm:$0xf]
    %v1975 = vld [vmem:[#allocation7 + $0x3c] sm:$0xf]
    %v1976 = vld [vmem:[#allocation7 + $0x40] sm:$0xf]
    %v1977 = vld [vmem:[#allocation7 + $0x44] sm:$0xf]
    %v1978 = vld [vmem:[#allocation7 + $0x48] sm:$0xf]
    %v1979 = vld [vmem:[#allocation7 + $0x4c] sm:$0xf]
    %v1980 = vld [vmem:[#allocation7 + $0x50] sm:$0xf]
    %v1981 = vld [vmem:[#allocation7 + $0x54] sm:$0xf]
    %v1982 = vld [vmem:[#allocation7 + $0x58] sm:$0xf]
    %v1983 = vld [vmem:[#allocation7 + $0x5c] sm:$0xf]
    %v1984 = vld [vmem:[#allocation7 + $0x60] sm:$0xf]
    %v1985 = vld [vmem:[#allocation7 + $0x64] sm:$0xf]
    %v1986 = vld [vmem:[#allocation7 + $0x68] sm:$0xf]
    %v1987 = vld [vmem:[#allocation7 + $0x6c] sm:$0xf]
    %v1988 = vld [vmem:[#allocation7 + $0x70] sm:$0xf]
    %v1989 = vld [vmem:[#allocation7 + $0x74] sm:$0xf]
    %v1990 = vld [vmem:[#allocation7 + $0x78] sm:$0xf]
    %v1991 = vld [vmem:[#allocation7 + $0x7c] sm:$0xf]
    %v1992 = vld [vmem:[#allocation7 + $0x80] sm:$0xf]
    %v1993 = vld [vmem:[#allocation7 + $0x84] sm:$0xf]
    %v1994 = vld [vmem:[#allocation7 + $0x88] sm:$0xf]
    %v1995 = vld [vmem:[#allocation7 + $0x8c] sm:$0xf]
    %v1996 = vld [vmem:[#allocation7 + $0x90] sm:$0xf]
    %v1997 = vld [vmem:[#allocation7 + $0x94] sm:$0xf]
    %v1998 = vld [vmem:[#allocation7 + $0x98] sm:$0xf]
    %v1999 = vld [vmem:[#allocation7 + $0x9c] sm:$0xf]
    %v2000 = vld [vmem:[#allocation7 + $0xa0] sm:$0xf]
    %v2001 = vld [vmem:[#allocation7 + $0xa4] sm:$0xf]
    %v2002 = vld [vmem:[#allocation7 + $0xa8] sm:$0xf]
    %v2003 = vld [vmem:[#allocation7 + $0xac] sm:$0xf]
    %v2004 = vld [vmem:[#allocation7 + $0xb0] sm:$0xf]
    %v2005 = vld [vmem:[#allocation7 + $0xb4] sm:$0xf]
    %v2006 = vld [vmem:[#allocation7 + $0xb8] sm:$0xf]
    %v2007 = vld [vmem:[#allocation7 + $0xbc] sm:$0xf]
    %v2008 = vld [vmem:[#allocation7 + $0xc0] sm:$0xf]
    %v2009 = vld [vmem:[#allocation7 + $0xc4] sm:$0xf]
    %v2010 = vld [vmem:[#allocation7 + $0xc8] sm:$0xf]
    %v2011 = vld [vmem:[#allocation7 + $0xcc] sm:$0xf]
    %v2012 = vld [vmem:[#allocation7 + $0xd0] sm:$0xf]
    %v2013 = vld [vmem:[#allocation7 + $0xd4] sm:$0xf]
    %v2014 = vld [vmem:[#allocation7 + $0xd8] sm:$0xf]
    %v2015 = vld [vmem:[#allocation7 + $0xdc] sm:$0xf]
    %v2016 = vld [vmem:[#allocation7 + $0xe0] sm:$0xf]
    %v2017 = vld [vmem:[#allocation7 + $0xe4] sm:$0xf]
    %v2018 = vld [vmem:[#allocation7 + $0xe8] sm:$0xf]
    %v2019 = vld [vmem:[#allocation7 + $0xec] sm:$0xf]
    %v2020 = vld [vmem:[#allocation7 + $0xf0] sm:$0xf]
    %v2021 = vld [vmem:[#allocation7 + $0xf4] sm:$0xf]
    %v2022 = vld [vmem:[#allocation7 + $0xf8] sm:$0xf]
    %v2023 = vld [vmem:[#allocation7 + $0xfc] sm:$0xf]
    %v2024 = vld [vmem:[#allocation7 + $0x100] sm:$0xf]
    %v2025 = vld [vmem:[#allocation7 + $0x104] sm:$0xf]
    %v2026 = vld [vmem:[#allocation7 + $0x108] sm:$0xf]
    %v2027 = vld [vmem:[#allocation7 + $0x10c] sm:$0xf]
    %v2028 = vld [vmem:[#allocation7 + $0x110] sm:$0xf]
    %v2029 = vld [vmem:[#allocation7 + $0x114] sm:$0xf]
    %v2030 = vld [vmem:[#allocation7 + $0x118] sm:$0xf]
    %v2031 = vld [vmem:[#allocation7 + $0x11c] sm:$0xf]
    %v2032 = vld [vmem:[#allocation7 + $0x120] sm:$0xf]
    %v2033 = vld [vmem:[#allocation7 + $0x124] sm:$0xf]
    %v2034 = vld [vmem:[#allocation7 + $0x128] sm:$0xf]
    %v2035 = vld [vmem:[#allocation7 + $0x12c] sm:$0xf]
    %v2036 = vld [vmem:[#allocation7 + $0x130] sm:$0xf]
    %v2037 = vld [vmem:[#allocation7 + $0x134] sm:$0xf]
    %v2038 = vld [vmem:[#allocation7 + $0x138] sm:$0xf]
    %v2039 = vld [vmem:[#allocation7 + $0x13c] sm:$0xf]
    %v2040 = vld [vmem:[#allocation7 + $0x140] sm:$0xf]
    %v2041 = vld [vmem:[#allocation7 + $0x144] sm:$0xf]
    %v2042 = vld [vmem:[#allocation7 + $0x148] sm:$0xf]
    %v2043 = vld [vmem:[#allocation7 + $0x14c] sm:$0xf]
    %v2044 = vld [vmem:[#allocation7 + $0x150] sm:$0xf]
    %v2045 = vld [vmem:[#allocation7 + $0x154] sm:$0xf]
    %v2046 = vld [vmem:[#allocation7 + $0x158] sm:$0xf]
    %v2047 = vld [vmem:[#allocation7 + $0x15c] sm:$0xf]
    %v2048 = vld [vmem:[#allocation7 + $0x160] sm:$0xf]
    %v2049 = vld [vmem:[#allocation7 + $0x164] sm:$0xf]
    %v2050 = vld [vmem:[#allocation7 + $0x168] sm:$0xf]
    %v2051 = vld [vmem:[#allocation7 + $0x16c] sm:$0xf]
    %v2052 = vld [vmem:[#allocation7 + $0x170] sm:$0xf]
    %v2053 = vld [vmem:[#allocation7 + $0x174] sm:$0xf]
    %v2054 = vld [vmem:[#allocation7 + $0x178] sm:$0xf]
    %v2055 = vld [vmem:[#allocation7 + $0x17c] sm:$0xf]
    %v2056 = vld [vmem:[#allocation7 + $0x180] sm:$0xf]
    %v2057 = vld [vmem:[#allocation7 + $0x184] sm:$0xf]
    %v2058 = vld [vmem:[#allocation7 + $0x188] sm:$0xf]
    %v2059 = vld [vmem:[#allocation7 + $0x18c] sm:$0xf]
    %v2060 = vld [vmem:[#allocation7 + $0x190] sm:$0xf]
    %v2061 = vld [vmem:[#allocation7 + $0x194] sm:$0xf]
    %v2062 = vld [vmem:[#allocation7 + $0x198] sm:$0xf]
    %v2063 = vld [vmem:[#allocation7 + $0x19c] sm:$0xf]
    %v2064 = vld [vmem:[#allocation7 + $0x1a0] sm:$0xf]
    %v2065 = vld [vmem:[#allocation7 + $0x1a4] sm:$0xf]
    %v2066 = vld [vmem:[#allocation7 + $0x1a8] sm:$0xf]
    %v2067 = vld [vmem:[#allocation7 + $0x1ac] sm:$0xf]
    %v2068 = vld [vmem:[#allocation7 + $0x1b0] sm:$0xf]
    %v2069 = vld [vmem:[#allocation7 + $0x1b4] sm:$0xf]
    %v2070 = vld [vmem:[#allocation7 + $0x1b8] sm:$0xf]
    %v2071 = vld [vmem:[#allocation7 + $0x1bc] sm:$0xf]
    %v2072 = vld [vmem:[#allocation7 + $0x1c0] sm:$0xf]
    %v2073 = vld [vmem:[#allocation7 + $0x1c4] sm:$0xf]
    %v2074 = vld [vmem:[#allocation7 + $0x1c8] sm:$0xf]
    %v2075 = vld [vmem:[#allocation7 + $0x1cc] sm:$0xf]
    %v2076 = vld [vmem:[#allocation7 + $0x1d0] sm:$0xf]
    %v2077 = vld [vmem:[#allocation7 + $0x1d4] sm:$0xf]
    %v2078 = vld [vmem:[#allocation7 + $0x1d8] sm:$0xf]
    %v2079 = vld [vmem:[#allocation7 + $0x1dc] sm:$0xf]
    %v2080 = vld [vmem:[#allocation7 + $0x1e0] sm:$0xf]
    %v2081 = vld [vmem:[#allocation7 + $0x1e4] sm:$0xf]
    %v2082 = vld [vmem:[#allocation7 + $0x1e8] sm:$0xf]
    %v2083 = vld [vmem:[#allocation7 + $0x1ec] sm:$0xf]
    %v2084 = vld [vmem:[#allocation7 + $0x1f0] sm:$0xf]
    %v2085 = vld [vmem:[#allocation7 + $0x1f4] sm:$0xf]
    %v2086 = vld [vmem:[#allocation7 + $0x1f8] sm:$0xf]
    %v2087 = vld [vmem:[#allocation7 + $0x1fc] sm:$0xf]
    %v2088 = vld [vmem:[%s6] sm:$0x1]
    %v2089 = vpack.c.bf16 %v1952, %v1952
    %v2090 = vpack.c.bf16 %v1953, %v1953
    %v2091 = vpack.c.bf16 %v1954, %v1954
    %v2092 = vpack.c.bf16 %v1955, %v1955
    %v2093 = vpack.c.bf16 %v1956, %v1956
    %v2094 = vpack.c.bf16 %v1957, %v1957
    %v2095 = vpack.c.bf16 %v1958, %v1958
    %v2096 = vpack.c.bf16 %v1959, %v1959
    %v2098 = vperm.slane %v2088, 0
    %v2228 = vunpack.c.l.b16 %v1960
    %v2229 = vunpack.c.l.b16 %v1961
    %v2230 = vunpack.c.l.b16 %v1962
    %v2231 = vunpack.c.l.b16 %v1963
    %v2232 = vunpack.c.l.b16 %v1964
    %v2233 = vunpack.c.l.b16 %v1965
    %v2234 = vunpack.c.l.b16 %v1966
    %v2235 = vunpack.c.l.b16 %v1967
    %v2236 = vunpack.c.l.b16 %v1968
    %v2237 = vunpack.c.l.b16 %v1969
    %v2238 = vunpack.c.l.b16 %v1970
    %v2239 = vunpack.c.l.b16 %v1971
    %v2240 = vunpack.c.l.b16 %v1972
    %v2241 = vunpack.c.l.b16 %v1973
    %v2242 = vunpack.c.l.b16 %v1974
    %v2243 = vunpack.c.l.b16 %v1975
    %v2244 = vunpack.c.l.b16 %v1976
    %v2245 = vunpack.c.l.b16 %v1977
    %v2246 = vunpack.c.l.b16 %v1978
    %v2247 = vunpack.c.l.b16 %v1979
    %v2248 = vunpack.c.l.b16 %v1980
    %v2249 = vunpack.c.l.b16 %v1981
    %v2250 = vunpack.c.l.b16 %v1982
    %v2251 = vunpack.c.l.b16 %v1983
    %v2252 = vunpack.c.l.b16 %v1984
    %v2253 = vunpack.c.l.b16 %v1985
    %v2254 = vunpack.c.l.b16 %v1986
    %v2255 = vunpack.c.l.b16 %v1987
    %v2256 = vunpack.c.l.b16 %v1988
    %v2257 = vunpack.c.l.b16 %v1989
    %v2258 = vunpack.c.l.b16 %v1990
    %v2259 = vunpack.c.l.b16 %v1991
    %v2260 = vunpack.c.l.b16 %v1992
    %v2261 = vunpack.c.l.b16 %v1993
    %v2262 = vunpack.c.l.b16 %v1994
    %v2263 = vunpack.c.l.b16 %v1995
    %v2264 = vunpack.c.l.b16 %v1996
    %v2265 = vunpack.c.l.b16 %v1997
    %v2266 = vunpack.c.l.b16 %v1998
    %v2267 = vunpack.c.l.b16 %v1999
    %v2268 = vunpack.c.l.b16 %v2000
    %v2269 = vunpack.c.l.b16 %v2001
    %v2270 = vunpack.c.l.b16 %v2002
    %v2271 = vunpack.c.l.b16 %v2003
    %v2272 = vunpack.c.l.b16 %v2004
    %v2273 = vunpack.c.l.b16 %v2005
    %v2274 = vunpack.c.l.b16 %v2006
    %v2275 = vunpack.c.l.b16 %v2007
    %v2276 = vunpack.c.l.b16 %v2008
    %v2277 = vunpack.c.l.b16 %v2009
    %v2278 = vunpack.c.l.b16 %v2010
    %v2279 = vunpack.c.l.b16 %v2011
    %v2280 = vunpack.c.l.b16 %v2012
    %v2281 = vunpack.c.l.b16 %v2013
    %v2282 = vunpack.c.l.b16 %v2014
    %v2283 = vunpack.c.l.b16 %v2015
    %v2284 = vunpack.c.l.b16 %v2016
    %v2285 = vunpack.c.l.b16 %v2017
    %v2286 = vunpack.c.l.b16 %v2018
    %v2287 = vunpack.c.l.b16 %v2019
    %v2288 = vunpack.c.l.b16 %v2020
    %v2289 = vunpack.c.l.b16 %v2021
    %v2290 = vunpack.c.l.b16 %v2022
    %v2291 = vunpack.c.l.b16 %v2023
    %v2292 = vunpack.c.l.b16 %v2024
    %v2293 = vunpack.c.l.b16 %v2025
    %v2294 = vunpack.c.l.b16 %v2026
    %v2295 = vunpack.c.l.b16 %v2027
    %v2296 = vunpack.c.l.b16 %v2028
    %v2297 = vunpack.c.l.b16 %v2029
    %v2298 = vunpack.c.l.b16 %v2030
    %v2299 = vunpack.c.l.b16 %v2031
    %v2300 = vunpack.c.l.b16 %v2032
    %v2301 = vunpack.c.l.b16 %v2033
    %v2302 = vunpack.c.l.b16 %v2034
    %v2303 = vunpack.c.l.b16 %v2035
    %v2304 = vunpack.c.l.b16 %v2036
    %v2305 = vunpack.c.l.b16 %v2037
    %v2306 = vunpack.c.l.b16 %v2038
    %v2307 = vunpack.c.l.b16 %v2039
    %v2308 = vunpack.c.l.b16 %v2040
    %v2309 = vunpack.c.l.b16 %v2041
    %v2310 = vunpack.c.l.b16 %v2042
    %v2311 = vunpack.c.l.b16 %v2043
    %v2312 = vunpack.c.l.b16 %v2044
    %v2313 = vunpack.c.l.b16 %v2045
    %v2314 = vunpack.c.l.b16 %v2046
    %v2315 = vunpack.c.l.b16 %v2047
    %v2316 = vunpack.c.l.b16 %v2048
    %v2317 = vunpack.c.l.b16 %v2049
    %v2318 = vunpack.c.l.b16 %v2050
    %v2319 = vunpack.c.l.b16 %v2051
    %v2320 = vunpack.c.l.b16 %v2052
    %v2321 = vunpack.c.l.b16 %v2053
    %v2322 = vunpack.c.l.b16 %v2054
    %v2323 = vunpack.c.l.b16 %v2055
    %v2324 = vunpack.c.l.b16 %v2056
    %v2325 = vunpack.c.l.b16 %v2057
    %v2326 = vunpack.c.l.b16 %v2058
    %v2327 = vunpack.c.l.b16 %v2059
    %v2328 = vunpack.c.l.b16 %v2060
    %v2329 = vunpack.c.l.b16 %v2061
    %v2330 = vunpack.c.l.b16 %v2062
    %v2331 = vunpack.c.l.b16 %v2063
    %v2332 = vunpack.c.l.b16 %v2064
    %v2333 = vunpack.c.l.b16 %v2065
    %v2334 = vunpack.c.l.b16 %v2066
    %v2335 = vunpack.c.l.b16 %v2067
    %v2336 = vunpack.c.l.b16 %v2068
    %v2337 = vunpack.c.l.b16 %v2069
    %v2338 = vunpack.c.l.b16 %v2070
    %v2339 = vunpack.c.l.b16 %v2071
    %v2340 = vunpack.c.l.b16 %v2072
    %v2341 = vunpack.c.l.b16 %v2073
    %v2342 = vunpack.c.l.b16 %v2074
    %v2343 = vunpack.c.l.b16 %v2075
    %v2344 = vunpack.c.l.b16 %v2076
    %v2345 = vunpack.c.l.b16 %v2077
    %v2346 = vunpack.c.l.b16 %v2078
    %v2347 = vunpack.c.l.b16 %v2079
    %v2348 = vunpack.c.l.b16 %v2080
    %v2349 = vunpack.c.l.b16 %v2081
    %v2350 = vunpack.c.l.b16 %v2082
    %v2351 = vunpack.c.l.b16 %v2083
    %v2352 = vunpack.c.l.b16 %v2084
    %v2353 = vunpack.c.l.b16 %v2085
    %v2354 = vunpack.c.l.b16 %v2086
    %v2355 = vunpack.c.l.b16 %v2087
    %v2356 = vpack.c.b16 %v2229, %v2228
    %v2357 = vpack.c.b16 %v2231, %v2230
    %v2358 = vpack.c.b16 %v2233, %v2232
    %v2359 = vpack.c.b16 %v2235, %v2234
    %v2360 = vpack.c.b16 %v2237, %v2236
    %v2361 = vpack.c.b16 %v2239, %v2238
    %v2362 = vpack.c.b16 %v2241, %v2240
    %v2363 = vpack.c.b16 %v2243, %v2242
    %v2364 = vpack.c.b16 %v2245, %v2244
    %v2365 = vpack.c.b16 %v2247, %v2246
    %v2366 = vpack.c.b16 %v2249, %v2248
    %v2367 = vpack.c.b16 %v2251, %v2250
    %v2368 = vpack.c.b16 %v2253, %v2252
    %v2369 = vpack.c.b16 %v2255, %v2254
    %v2370 = vpack.c.b16 %v2257, %v2256
    %v2371 = vpack.c.b16 %v2259, %v2258
    %v2372 = vpack.c.b16 %v2261, %v2260
    %v2373 = vpack.c.b16 %v2263, %v2262
    %v2374 = vpack.c.b16 %v2265, %v2264
    %v2375 = vpack.c.b16 %v2267, %v2266
    %v2376 = vpack.c.b16 %v2269, %v2268
    %v2377 = vpack.c.b16 %v2271, %v2270
    %v2378 = vpack.c.b16 %v2273, %v2272
    %v2379 = vpack.c.b16 %v2275, %v2274
    %v2380 = vpack.c.b16 %v2277, %v2276
    %v2381 = vpack.c.b16 %v2279, %v2278
    %v2382 = vpack.c.b16 %v2281, %v2280
    %v2383 = vpack.c.b16 %v2283, %v2282
    %v2384 = vpack.c.b16 %v2285, %v2284
    %v2385 = vpack.c.b16 %v2287, %v2286
    %v2386 = vpack.c.b16 %v2289, %v2288
    %v2387 = vpack.c.b16 %v2291, %v2290
    %v2388 = vpack.c.b16 %v2293, %v2292
    %v2389 = vpack.c.b16 %v2295, %v2294
    %v2390 = vpack.c.b16 %v2297, %v2296
    %v2391 = vpack.c.b16 %v2299, %v2298
    %v2392 = vpack.c.b16 %v2301, %v2300
    %v2393 = vpack.c.b16 %v2303, %v2302
    %v2394 = vpack.c.b16 %v2305, %v2304
    %v2395 = vpack.c.b16 %v2307, %v2306
    %v2396 = vpack.c.b16 %v2309, %v2308
    %v2397 = vpack.c.b16 %v2311, %v2310
    %v2398 = vpack.c.b16 %v2313, %v2312
    %v2399 = vpack.c.b16 %v2315, %v2314
    %v2400 = vpack.c.b16 %v2317, %v2316
    %v2401 = vpack.c.b16 %v2319, %v2318
    %v2402 = vpack.c.b16 %v2321, %v2320
    %v2403 = vpack.c.b16 %v2323, %v2322
    %v2404 = vpack.c.b16 %v2325, %v2324
    %v2405 = vpack.c.b16 %v2327, %v2326
    %v2406 = vpack.c.b16 %v2329, %v2328
    %v2407 = vpack.c.b16 %v2331, %v2330
    %v2408 = vpack.c.b16 %v2333, %v2332
    %v2409 = vpack.c.b16 %v2335, %v2334
    %v2410 = vpack.c.b16 %v2337, %v2336
    %v2411 = vpack.c.b16 %v2339, %v2338
    %v2412 = vpack.c.b16 %v2341, %v2340
    %v2413 = vpack.c.b16 %v2343, %v2342
    %v2414 = vpack.c.b16 %v2345, %v2344
    %v2415 = vpack.c.b16 %v2347, %v2346
    %v2416 = vpack.c.b16 %v2349, %v2348
    %v2417 = vpack.c.b16 %v2351, %v2350
    %v2418 = vpack.c.b16 %v2353, %v2352
    %v2419 = vpack.c.b16 %v2355, %v2354
    %2484 = vmatpush.bf16.msra.mxu0 %v2363
    %2485 = vmatpush.bf16.msra.mxu0 %v2362
    %2486 = vmatpush.bf16.msra.mxu0 %v2361
    %2487 = vmatpush.bf16.msra.mxu0 %v2360
    %2488 = vmatpush.bf16.msra.mxu0 %v2359
    %2489 = vmatpush.bf16.msra.mxu0 %v2358
    %2490 = vmatpush.bf16.msra.mxu0 %v2357
    %2491 = vmatpush.bf16.msra.mxu0 %v2356
    %2492 = vmatmul.bf16.gmra.mxu0 %v2089
    %v2493 = vpop.f32.mrf.mxu0
    %v2494 = vadd.f32 %v2098, %v2493
    %v2495 = vpop.f32.mrf.mxu0
    %2496 = vdwg.mxu0
    %2497 = vmatpush.bf16.msra.mxu0 %v2371
    %2498 = vmatpush.bf16.msra.mxu0 %v2370
    %2499 = vmatpush.bf16.msra.mxu0 %v2369
    %2500 = vmatpush.bf16.msra.mxu0 %v2368
    %2501 = vmatpush.bf16.msra.mxu0 %v2367
    %2502 = vmatpush.bf16.msra.mxu0 %v2366
    %2503 = vmatpush.bf16.msra.mxu0 %v2365
    %2504 = vmatpush.bf16.msra.mxu0 %v2364
    %2505 = vmatmul.bf16.gmra.mxu0 %v2090
    %v2506 = vpop.f32.mrf.mxu0
    %v2507 = vadd.f32 %v2494, %v2506
    %v2508 = vpop.f32.mrf.mxu0
    %2509 = vdwg.mxu0
    %2510 = vmatpush.bf16.msra.mxu0 %v2379
    %2511 = vmatpush.bf16.msra.mxu0 %v2378
    %2512 = vmatpush.bf16.msra.mxu0 %v2377
    %2513 = vmatpush.bf16.msra.mxu0 %v2376
    %2514 = vmatpush.bf16.msra.mxu0 %v2375
    %2515 = vmatpush.bf16.msra.mxu0 %v2374
    %2516 = vmatpush.bf16.msra.mxu0 %v2373
    %2517 = vmatpush.bf16.msra.mxu0 %v2372
    %2518 = vmatmul.bf16.gmra.mxu0 %v2091
    %v2519 = vpop.f32.mrf.mxu0
    %v2520 = vadd.f32 %v2507, %v2519
    %v2521 = vpop.f32.mrf.mxu0
    %2522 = vdwg.mxu0
    %2523 = vmatpush.bf16.msra.mxu0 %v2387
    %2524 = vmatpush.bf16.msra.mxu0 %v2386
    %2525 = vmatpush.bf16.msra.mxu0 %v2385
    %2526 = vmatpush.bf16.msra.mxu0 %v2384
    %2527 = vmatpush.bf16.msra.mxu0 %v2383
    %2528 = vmatpush.bf16.msra.mxu0 %v2382
    %2529 = vmatpush.bf16.msra.mxu0 %v2381
    %2530 = vmatpush.bf16.msra.mxu0 %v2380
    %2531 = vmatmul.bf16.gmra.mxu0 %v2092
    %v2532 = vpop.f32.mrf.mxu0
    %v2533 = vadd.f32 %v2520, %v2532
    %v2534 = vpop.f32.mrf.mxu0
    %2535 = vdwg.mxu0
    %2536 = vmatpush.bf16.msra.mxu0 %v2395
    %2537 = vmatpush.bf16.msra.mxu0 %v2394
    %2538 = vmatpush.bf16.msra.mxu0 %v2393
    %2539 = vmatpush.bf16.msra.mxu0 %v2392
    %2540 = vmatpush.bf16.msra.mxu0 %v2391
    %2541 = vmatpush.bf16.msra.mxu0 %v2390
    %2542 = vmatpush.bf16.msra.mxu0 %v2389
    %2543 = vmatpush.bf16.msra.mxu0 %v2388
    %2544 = vmatmul.bf16.gmra.mxu0 %v2093
    %v2545 = vpop.f32.mrf.mxu0
    %v2546 = vadd.f32 %v2533, %v2545
    %v2547 = vpop.f32.mrf.mxu0
    %2548 = vdwg.mxu0
    %2549 = vmatpush.bf16.msra.mxu0 %v2403
    %2550 = vmatpush.bf16.msra.mxu0 %v2402
    %2551 = vmatpush.bf16.msra.mxu0 %v2401
    %2552 = vmatpush.bf16.msra.mxu0 %v2400
    %2553 = vmatpush.bf16.msra.mxu0 %v2399
    %2554 = vmatpush.bf16.msra.mxu0 %v2398
    %2555 = vmatpush.bf16.msra.mxu0 %v2397
    %2556 = vmatpush.bf16.msra.mxu0 %v2396
    %2557 = vmatmul.bf16.gmra.mxu0 %v2094
    %v2558 = vpop.f32.mrf.mxu0
    %v2559 = vadd.f32 %v2546, %v2558
    %v2560 = vpop.f32.mrf.mxu0
    %2561 = vdwg.mxu0
    %2562 = vmatpush.bf16.msra.mxu0 %v2411
    %2563 = vmatpush.bf16.msra.mxu0 %v2410
    %2564 = vmatpush.bf16.msra.mxu0 %v2409
    %2565 = vmatpush.bf16.msra.mxu0 %v2408
    %2566 = vmatpush.bf16.msra.mxu0 %v2407
    %2567 = vmatpush.bf16.msra.mxu0 %v2406
    %2568 = vmatpush.bf16.msra.mxu0 %v2405
    %2569 = vmatpush.bf16.msra.mxu0 %v2404
    %2570 = vmatmul.bf16.gmra.mxu0 %v2095
    %v2571 = vpop.f32.mrf.mxu0
    %v2572 = vadd.f32 %v2559, %v2571
    %v2573 = vpop.f32.mrf.mxu0
    %2574 = vdwg.mxu0
    %2575 = vmatpush.bf16.msra.mxu0 %v2419
    %2576 = vmatpush.bf16.msra.mxu0 %v2418
    %2577 = vmatpush.bf16.msra.mxu0 %v2417
    %2578 = vmatpush.bf16.msra.mxu0 %v2416
    %2579 = vmatpush.bf16.msra.mxu0 %v2415
    %2580 = vmatpush.bf16.msra.mxu0 %v2414
    %2581 = vmatpush.bf16.msra.mxu0 %v2413
    %2582 = vmatpush.bf16.msra.mxu0 %v2412
    %2583 = vmatmul.bf16.gmra.mxu0 %v2096
    %v2584 = vpop.f32.mrf.mxu0
    %v2585 = vadd.f32 %v2572, %v2584
    %v2586 = vpop.f32.mrf.mxu0
    %2587 = vdwg.mxu0
    %v2588 = vmax.f32 %v2585, 0.0
    %v2589 = vld [vmem:[#allocation9] sm:$0xf]
    %v2590 = vld [vmem:[#allocation9 + $0x4] sm:$0xf]
    %v2591 = vld [vmem:[#allocation9 + $0x8] sm:$0xf]
    %v2592 = vld [vmem:[#allocation9 + $0xc] sm:$0xf]
    %v2593 = vld [vmem:[#allocation9 + $0x10] sm:$0xf]
    %v2594 = vld [vmem:[#allocation9 + $0x14] sm:$0xf]
    %v2595 = vld [vmem:[#allocation9 + $0x18] sm:$0xf]
    %v2596 = vld [vmem:[#allocation9 + $0x1c] sm:$0xf]
    %v2597 = vld [vmem:[#allocation9 + $0x20] sm:$0xf]
    %v2598 = vld [vmem:[#allocation9 + $0x24] sm:$0xf]
    %v2599 = vld [vmem:[#allocation9 + $0x28] sm:$0xf]
    %v2600 = vld [vmem:[#allocation9 + $0x2c] sm:$0xf]
    %v2601 = vld [vmem:[#allocation9 + $0x30] sm:$0xf]
    %v2602 = vld [vmem:[#allocation9 + $0x34] sm:$0xf]
    %v2603 = vld [vmem:[#allocation9 + $0x38] sm:$0xf]
    %v2604 = vld [vmem:[#allocation9 + $0x3c] sm:$0xf]
    %v2605 = vld [vmem:[%s8] sm:$0x1]
    %v2606 = vpack.c.bf16 %v2588, %v2588
    %v2608 = vperm.slane %v2605, 0
    %v2626 = vunpack.c.l.b16 %v2589
    %v2627 = vunpack.c.l.b16 %v2590
    %v2628 = vunpack.c.l.b16 %v2591
    %v2629 = vunpack.c.l.b16 %v2592
    %v2630 = vunpack.c.l.b16 %v2593
    %v2631 = vunpack.c.l.b16 %v2594
    %v2632 = vunpack.c.l.b16 %v2595
    %v2633 = vunpack.c.l.b16 %v2596
    %v2634 = vunpack.c.l.b16 %v2597
    %v2635 = vunpack.c.l.b16 %v2598
    %v2636 = vunpack.c.l.b16 %v2599
    %v2637 = vunpack.c.l.b16 %v2600
    %v2638 = vunpack.c.l.b16 %v2601
    %v2639 = vunpack.c.l.b16 %v2602
    %v2640 = vunpack.c.l.b16 %v2603
    %v2641 = vunpack.c.l.b16 %v2604
    %v2642 = vpack.c.b16 %v2627, %v2626
    %v2643 = vpack.c.b16 %v2629, %v2628
    %v2644 = vpack.c.b16 %v2631, %v2630
    %v2645 = vpack.c.b16 %v2633, %v2632
    %v2646 = vpack.c.b16 %v2635, %v2634
    %v2647 = vpack.c.b16 %v2637, %v2636
    %v2648 = vpack.c.b16 %v2639, %v2638
    %v2649 = vpack.c.b16 %v2641, %v2640
    %2658 = vmatpush.bf16.msra.mxu0 %v2649
    %2659 = vmatpush.bf16.msra.mxu0 %v2648
    %2660 = vmatpush.bf16.msra.mxu0 %v2647
    %2661 = vmatpush.bf16.msra.mxu0 %v2646
    %2662 = vmatpush.bf16.msra.mxu0 %v2645
    %2663 = vmatpush.bf16.msra.mxu0 %v2644
    %2664 = vmatpush.bf16.msra.mxu0 %v2643
    %2665 = vmatpush.bf16.msra.mxu0 %v2642
    %2666 = vmatmul.bf16.gmra.mxu0 %v2606
    %v2667 = vpop.f32.mrf.mxu0
    %v2668 = vadd.f32 %v2608, %v2667
    %v2669 = vpop.f32.mrf.mxu0
    %2670 = vdwg.mxu0
    %v2671 = vmax.f32 %v2668, 0.0
    %v2672 = vld [vmem:[#allocation10] sm:$0xf]
    %v2673 = vld [vmem:[#allocation10 + $0x4] sm:$0xf]
    %v2674 = vld [vmem:[#allocation10 + $0x8] sm:$0xf]
    %v2675 = vld [vmem:[#allocation10 + $0xc] sm:$0xf]
    %v2676 = vld [vmem:[#allocation10 + $0x10] sm:$0xf]
    %v2677 = vld [vmem:[#allocation10 + $0x14] sm:$0xf]
    %v2678 = vld [vmem:[#allocation10 + $0x18] sm:$0xf]
    %v2679 = vld [vmem:[#allocation10 + $0x1c] sm:$0xf]
    %v2680 = vld [vmem:[#allocation10 + $0x20] sm:$0xf]
    %v2681 = vld [vmem:[#allocation10 + $0x24] sm:$0xf]
    %v2682 = vld [vmem:[#allocation10 + $0x28] sm:$0xf]
    %v2683 = vld [vmem:[#allocation10 + $0x2c] sm:$0xf]
    %v2684 = vld [vmem:[#allocation10 + $0x30] sm:$0xf]
    %v2685 = vld [vmem:[#allocation10 + $0x34] sm:$0xf]
    %v2686 = vld [vmem:[#allocation10 + $0x38] sm:$0xf]
    %v2687 = vld [vmem:[#allocation10 + $0x3c] sm:$0xf]
    %v2688 = vld [vmem:[%s10] sm:$0x1]
    %v2689 = vpack.c.bf16 %v2671, %v2671
    %v2691 = vperm.slane %v2688, 0
    %v2709 = vunpack.c.l.b16 %v2672
    %v2710 = vunpack.c.l.b16 %v2673
    %v2711 = vunpack.c.l.b16 %v2674
    %v2712 = vunpack.c.l.b16 %v2675
    %v2713 = vunpack.c.l.b16 %v2676
    %v2714 = vunpack.c.l.b16 %v2677
    %v2715 = vunpack.c.l.b16 %v2678
    %v2716 = vunpack.c.l.b16 %v2679
    %v2717 = vunpack.c.l.b16 %v2680
    %v2718 = vunpack.c.l.b16 %v2681
    %v2719 = vunpack.c.l.b16 %v2682
    %v2720 = vunpack.c.l.b16 %v2683
    %v2721 = vunpack.c.l.b16 %v2684
    %v2722 = vunpack.c.l.b16 %v2685
    %v2723 = vunpack.c.l.b16 %v2686
    %v2724 = vunpack.c.l.b16 %v2687
    %v2725 = vpack.c.b16 %v2710, %v2709
    %v2726 = vpack.c.b16 %v2712, %v2711
    %v2727 = vpack.c.b16 %v2714, %v2713
    %v2728 = vpack.c.b16 %v2716, %v2715
    %v2729 = vpack.c.b16 %v2718, %v2717
    %v2730 = vpack.c.b16 %v2720, %v2719
    %v2731 = vpack.c.b16 %v2722, %v2721
    %v2732 = vpack.c.b16 %v2724, %v2723
    %2741 = vmatpush.bf16.msra.mxu0 %v2732
    %2742 = vmatpush.bf16.msra.mxu0 %v2731
    %2743 = vmatpush.bf16.msra.mxu0 %v2730
    %2744 = vmatpush.bf16.msra.mxu0 %v2729
    %2745 = vmatpush.bf16.msra.mxu0 %v2728
    %2746 = vmatpush.bf16.msra.mxu0 %v2727
    %2747 = vmatpush.bf16.msra.mxu0 %v2726
    %2748 = vmatpush.bf16.msra.mxu0 %v2725
    %2749 = vmatmul.bf16.gmra.mxu0 %v2689
    %v2750 = vpop.f32.mrf.mxu0
    %v2751 = vadd.f32 %v2691, %v2750
    %v2752 = vpop.f32.mrf.mxu0
    %2753 = vdwg.mxu0
    %v2754 = vmax.f32 %v2751, 0.0
    %v2755 = vld [vmem:[#allocation12] sm:$0xf]
    %v2756 = vld [vmem:[#allocation12 + $0x4] sm:$0xf]
    %v2757 = vld [vmem:[#allocation12 + $0x8] sm:$0xf]
    %v2758 = vld [vmem:[#allocation12 + $0xc] sm:$0xf]
    %v2759 = vld [vmem:[#allocation12 + $0x10] sm:$0xf]
    %v2760 = vld [vmem:[#allocation12 + $0x14] sm:$0xf]
    %v2761 = vld [vmem:[#allocation12 + $0x18] sm:$0xf]
    %v2762 = vld [vmem:[#allocation12 + $0x1c] sm:$0xf]
    %v2763 = vld [vmem:[#allocation12 + $0x20] sm:$0xf]
    %v2764 = vld [vmem:[#allocation12 + $0x24] sm:$0xf]
    %v2765 = vld [vmem:[#allocation12 + $0x28] sm:$0xf]
    %v2766 = vld [vmem:[#allocation12 + $0x2c] sm:$0xf]
    %v2767 = vld [vmem:[#allocation12 + $0x30] sm:$0xf]
    %v2768 = vld [vmem:[#allocation12 + $0x34] sm:$0xf]
    %v2769 = vld [vmem:[#allocation12 + $0x38] sm:$0xf]
    %v2770 = vld [vmem:[#allocation12 + $0x3c] sm:$0xf]
    %v2771 = vld [vmem:[%s12] sm:$0x1]
    %v2772 = vpack.c.bf16 %v2754, %v2754
    %v2774 = vperm.slane %v2771, 0
    %v2792 = vunpack.c.l.b16 %v2755
    %v2793 = vunpack.c.l.b16 %v2756
    %v2794 = vunpack.c.l.b16 %v2757
    %v2795 = vunpack.c.l.b16 %v2758
    %v2796 = vunpack.c.l.b16 %v2759
    %v2797 = vunpack.c.l.b16 %v2760
    %v2798 = vunpack.c.l.b16 %v2761
    %v2799 = vunpack.c.l.b16 %v2762
    %v2800 = vunpack.c.l.b16 %v2763
    %v2801 = vunpack.c.l.b16 %v2764
    %v2802 = vunpack.c.l.b16 %v2765
    %v2803 = vunpack.c.l.b16 %v2766
    %v2804 = vunpack.c.l.b16 %v2767
    %v2805 = vunpack.c.l.b16 %v2768
    %v2806 = vunpack.c.l.b16 %v2769
    %v2807 = vunpack.c.l.b16 %v2770
    %v2808 = vpack.c.b16 %v2793, %v2792
    %v2809 = vpack.c.b16 %v2795, %v2794
    %v2810 = vpack.c.b16 %v2797, %v2796
    %v2811 = vpack.c.b16 %v2799, %v2798
    %v2812 = vpack.c.b16 %v2801, %v2800
    %v2813 = vpack.c.b16 %v2803, %v2802
    %v2814 = vpack.c.b16 %v2805, %v2804
    %v2815 = vpack.c.b16 %v2807, %v2806
    %2824 = vmatpush.bf16.msra.mxu0 %v2815
    %2825 = vmatpush.bf16.msra.mxu0 %v2814
    %2826 = vmatpush.bf16.msra.mxu0 %v2813
    %2827 = vmatpush.bf16.msra.mxu0 %v2812
    %2828 = vmatpush.bf16.msra.mxu0 %v2811
    %2829 = vmatpush.bf16.msra.mxu0 %v2810
    %2830 = vmatpush.bf16.msra.mxu0 %v2809
    %2831 = vmatpush.bf16.msra.mxu0 %v2808
    %2832 = vmatmul.bf16.gmra.mxu0 %v2772
    %v2833 = vpop.f32.mrf.mxu0
    %v2834 = vadd.f32 %v2774, %v2833
    %v2835 = vpop.f32.mrf.mxu0
    %2836 = vdwg.mxu0
    %2837 = vst [vmem:[%s13] sm:$0xff] %v2834
    // Predicated region
    $region82: #{_forward_impl.1} parent=1 // pred_check
      _
    $region83: #{_forward_impl.1} parent=1 // pred_check_branch
      %2839 = sbr.rel (0) target = $region85
    $region84: #{_forward_impl.1} parent=1 // pred_region
      _
    $region85: #{_forward_impl.1} parent=1 // pred_fallthru
      _
    // Predicated region
    $region86: #{_forward_impl.1} parent=1 // pred_check
      _
    $region87: #{_forward_impl.1} parent=1 // pred_check_branch
      %2841 = sbr.rel (0) target = $region89
    $region88: #{_forward_impl.1} parent=1 // pred_region
      _
    $region89: #{_forward_impl.1} parent=1 // pred_fallthru
      _
    %2842 = vsyncpa [#allocation3], 1
    %2843 = vsyncpa [#allocation5], 1
    %2844 = vsyncpa [#allocation8], 1
    %2845 = vsyncpa [#allocation11], 1

</llo_original>
